<compile_context>
chip_gen: v7x
topology: tpu7x:2x2x1
jax: 0.10.0
libtpu: 0.0.40
codegen_flags: <defaults>
</compile_context>

<pallas_src>
import functools

import jax
import jax.numpy as jnp
from jax import lax
from jax.experimental import pallas as pl
from jax.experimental.pallas import tpu as pltpu


def token_proj_kernel(x_ref, t_ref, w1_ref, b1_ref, w2_ref, b2_ref,
                      w3_ref, b3_ref, o_ref, *, bb, n_q, n_kv):
    """One grid step processes `bb` batch elements.

    x_ref : (bb*N, Din)   folded X_c slab (f32)
    t_ref : (bb*T, Dt)    folded Tout slab (f32)
    w1_ref: (Din, Hp)     linear1 weight (transposed, hidden padded, bf16)
    b1_ref: (1, Hp)       f32
    w2_ref: (Dt, Hp)      linear2 weight (transposed, hidden padded, bf16)
    b2_ref: (1, Hp)       f32
    w3_ref: (Dt, Din)     linear3 weight (transposed, bf16)
    b3_ref: (1, Din)      f32
    o_ref : (bb*N, Din)
    """
    x = x_ref[...]                                   # (bb*N, Din) f32
    t = t_ref[...]                                   # (bb*T, Dt)  f32
    t16 = t.astype(jnp.bfloat16)

    # Folded projections: all bb batch elements share one MXU pass each,
    # bf16 operands + f32 accumulation, biases added in f32.
    xc_out = jnp.dot(x.astype(jnp.bfloat16), w1_ref[...],
                     preferred_element_type=jnp.float32) + b1_ref[...]   # (bb*N, Hp)
    t2 = jnp.dot(t16, w2_ref[...],
                 preferred_element_type=jnp.float32) + b2_ref[...]       # (bb*T, Hp)
    v = jnp.dot(t16, w3_ref[...],
                preferred_element_type=jnp.float32) + b3_ref[...]        # (bb*T, Din)

    # Attention + residual per batch element.  `bb` is a small static int,
    # so this Python loop is fully unrolled; all slices are static and
    # sublane-aligned (f32 rows, multiples of 8).
    for b in range(bb):
        qs, ks = b * n_q, b * n_kv
        xo = xc_out[qs:qs + n_q, :].astype(jnp.bfloat16)    # (N, Hp)
        tb = t2[ks:ks + n_kv, :].astype(jnp.bfloat16)       # (T, Hp)
        vb = v[ks:ks + n_kv, :].astype(jnp.bfloat16)        # (T, Din)

        # scores[n, t] = xo[n, :] . tb[t, :]  (padded hidden columns are
        # exactly zero in both operands, so the contraction is exact).
        scores = lax.dot_general(
            xo, tb,
            dimension_numbers=(((1,), (1,)), ((), ())),
            preferred_element_type=jnp.float32)              # (N, T)

        # softmax over dim=1 of (B, N, T)  ==  axis 0 of this (N, T) tile
        m = jnp.max(scores, axis=0, keepdims=True)           # (1, T)
        e = jnp.exp(scores - m)
        s = jnp.sum(e, axis=0, keepdims=True)                # (1, T)
        attn = (e * pl.reciprocal(s, approx=True)).astype(jnp.bfloat16)

        out_b = x[qs:qs + n_q, :] + jnp.dot(
            attn, vb, preferred_element_type=jnp.float32)    # (N, Din)
        o_ref[qs:qs + n_q, :] = out_b.astype(o_ref.dtype)


def prepare_params(params, compute_dtype=jnp.bfloat16):
    """One-time weight re-layout: transpose to (in, out), pad hidden dim to a
    lane-dense multiple of 128, cast weights to the MXU compute dtype.

    Call this once at model init and reuse the result for every forward call
    (keeps the per-call wrapper free of HBM-round-tripping layout ops).
    """
    W1, b1, W2, b2, W3, b3 = params
    H = W1.shape[0]
    H_pad = ((H + 127) // 128) * 128
    pad_h = H_pad - H

    w1 = jnp.pad(W1.T, ((0, 0), (0, pad_h))).astype(compute_dtype)   # (Din, Hp)
    b1p = jnp.pad(b1, (0, pad_h)).astype(jnp.float32)[None, :]        # (1, Hp)
    w2 = jnp.pad(W2.T, ((0, 0), (0, pad_h))).astype(compute_dtype)   # (Dt, Hp)
    b2p = jnp.pad(b2, (0, pad_h)).astype(jnp.float32)[None, :]        # (1, Hp)
    w3 = W3.T.astype(compute_dtype)                                   # (Dt, Din)
    b3p = b3.astype(jnp.float32)[None, :]                             # (1, Din)
    return (w1, b1p, w2, b2p, w3, b3p)


def _default_batch_block(batch):
    """v7x has 2 TensorCores per chip -> keep >=2 grid steps so batches shard
    across cores; single-TC chips (v5e/v6e) fold everything into one step."""
    kind = ""
    try:
        kind = jax.devices()[0].device_kind.lower()
    except Exception:
        pass
    if ("v7" in kind or "tpu7" in kind) and batch > 1:
        return batch // 2 if batch % 2 == 0 else 1
    return batch


def token_proj_forward(X_c, Tout, prepared_params, *, batch_block=None):
    """Forward pass of `toeken_proj`.

    X_c  : (B, N, input_dim)
    Tout : (B, T, 512)
    prepared_params : output of `prepare_params(...)` (pre-transformed once).
    returns: (B, N, input_dim)
    """
    w1, b1p, w2, b2p, w3, b3p = prepared_params
    B, N, Din = X_c.shape
    _, T, Dt = Tout.shape
    Hp = w1.shape[1]

    bb = _default_batch_block(B) if batch_block is None else batch_block
    if B % bb != 0:
        bb = 1
    grid = (B // bb,)

    # Free (contiguous) wrapper reshapes so the kernel sees 2-D slabs.
    x2d = X_c.reshape(B * N, Din)
    t2d = Tout.reshape(B * T, Dt)

    out = pl.pallas_call(
        functools.partial(token_proj_kernel, bb=bb, n_q=N, n_kv=T),
        out_shape=jax.ShapeDtypeStruct((B * N, Din), X_c.dtype),
        grid=grid,
        in_specs=[
            pl.BlockSpec((bb * N, Din), lambda b: (b, 0)),
            pl.BlockSpec((bb * T, Dt), lambda b: (b, 0)),
            pl.BlockSpec((Din, Hp), lambda b: (0, 0)),
            pl.BlockSpec((1, Hp), lambda b: (0, 0)),
            pl.BlockSpec((Dt, Hp), lambda b: (0, 0)),
            pl.BlockSpec((1, Hp), lambda b: (0, 0)),
            pl.BlockSpec((Dt, Din), lambda b: (0, 0)),
            pl.BlockSpec((1, Din), lambda b: (0, 0)),
        ],
        out_specs=pl.BlockSpec((bb * N, Din), lambda b: (b, 0)),
        compiler_params=pltpu.CompilerParams(
            dimension_semantics=("parallel",)),
    )(x2d, t2d, w1, b1p, w2, b2p, w3, b3p)
    return out.reshape(B, N, Din)


if __name__ == "__main__":
    # Small shapes consistent with the module: input_dim=64, hidden_dim=383,
    # Tout feature dim fixed at 512 by linear2/linear3; small batch / seq.
    B, N, T = 2, 16, 8
    Din, Dt, H = 64, 512, 383

    key = jax.random.PRNGKey(0)
    k = jax.random.split(key, 8)
    X_c = jax.random.normal(k[0], (B, N, Din), dtype=jnp.float32)
    Tout = jax.random.normal(k[1], (B, T, Dt), dtype=jnp.float32)
    W1 = jax.random.normal(k[2], (H, Din), dtype=jnp.float32) * 0.02
    b1 = jax.random.normal(k[3], (H,), dtype=jnp.float32) * 0.02
    W2 = jax.random.normal(k[4], (H, Dt), dtype=jnp.float32) * 0.02
    b2 = jax.random.normal(k[5], (H,), dtype=jnp.float32) * 0.02
    W3 = jax.random.normal(k[6], (Din, Dt), dtype=jnp.float32) * 0.02
    b3 = jax.random.normal(k[7], (Din,), dtype=jnp.float32) * 0.02

    # One-time weight re-layout (hoisted out of the per-call hot path).
    prepared = prepare_params((W1, b1, W2, b2, W3, b3))

    fwd = jax.jit(token_proj_forward)
    out = jax.block_until_ready(fwd(X_c, Tout, prepared))

    # Pure-JAX fp32 reference (mirrors the PyTorch forward exactly).
    X_c_out = X_c @ W1.T + b1                          # (B, N, H)
    t2 = jnp.swapaxes(Tout @ W2.T + b2, 1, 2)          # (B, H, T)
    scores = jnp.einsum('bnh,bht->bnt', X_c_out, t2)   # (B, N, T)
    attn = jax.nn.softmax(scores, axis=1)              # softmax over dim=1 (N)
    liner3 = Tout @ W3.T + b3                          # (B, T, Din)
    ref = X_c + jnp.einsum('bnt,btd->bnd', attn, liner3)

    assert out.shape == (B, N, Din)
    # bf16 MXU operands with f32 accumulation: tolerance relaxed vs the fp32
    # reference (observed errors are a few 1e-3; bound set with margin).
    assert jnp.allclose(out, ref, atol=3e-2, rtol=3e-2), "mismatch vs reference"
    print("KERNEL_OK")
</pallas_src>

<mosaic_0001>
module attributes {stable_mosaic.version = 11 : i64} {
  func.func @token_proj_kernel(%arg0: i32, %arg1: memref<32x64xf32, #tpu.memory_space<vmem>>, %arg2: memref<16x512xf32, #tpu.memory_space<vmem>>, %arg3: memref<64x384xbf16, #tpu.memory_space<vmem>>, %arg4: memref<1x384xf32, #tpu.memory_space<vmem>>, %arg5: memref<512x384xbf16, #tpu.memory_space<vmem>>, %arg6: memref<1x384xf32, #tpu.memory_space<vmem>>, %arg7: memref<512x64xbf16, #tpu.memory_space<vmem>>, %arg8: memref<1x64xf32, #tpu.memory_space<vmem>>, %arg9: memref<32x64xf32, #tpu.memory_space<vmem>>) attributes {dimension_semantics = [#tpu.dimension_semantics<parallel>], iteration_bounds = array<i64: 1>, scalar_prefetch = 0 : i64, scratch_operands = 0 : i64, tpu.core_type = #tpu.core_type<tc>, window_params = [{transform_indices = @transform_0, window_bounds = array<i64: 32, 64>}, {transform_indices = @transform_1, window_bounds = array<i64: 16, 512>}, {pipeline_mode = #tpu.pipeline_mode<synchronous>, transform_indices = @transform_2, window_bounds = array<i64: 64, 384>}, {pipeline_mode = #tpu.pipeline_mode<synchronous>, transform_indices = @transform_3, window_bounds = array<i64: 1, 384>}, {pipeline_mode = #tpu.pipeline_mode<synchronous>, transform_indices = @transform_4, window_bounds = array<i64: 512, 384>}, {pipeline_mode = #tpu.pipeline_mode<synchronous>, transform_indices = @transform_5, window_bounds = array<i64: 1, 384>}, {pipeline_mode = #tpu.pipeline_mode<synchronous>, transform_indices = @transform_6, window_bounds = array<i64: 512, 64>}, {pipeline_mode = #tpu.pipeline_mode<synchronous>, transform_indices = @transform_7, window_bounds = array<i64: 1, 64>}, {transform_indices = @transform_8, window_bounds = array<i64: 32, 64>}]} {
    %c0 = arith.constant 0 : index
    %c0_0 = arith.constant 0 : index
    %0 = vector.load %arg1[%c0, %c0_0] : memref<32x64xf32, #tpu.memory_space<vmem>>, vector<32x64xf32>
    %c0_1 = arith.constant 0 : index
    %c0_2 = arith.constant 0 : index
    %1 = vector.load %arg2[%c0_1, %c0_2] : memref<16x512xf32, #tpu.memory_space<vmem>>, vector<16x512xf32>
    %2 = arith.truncf %1 : vector<16x512xf32> to vector<16x512xbf16>
    %3 = arith.truncf %0 : vector<32x64xf32> to vector<32x64xbf16>
    %c0_3 = arith.constant 0 : index
    %c0_4 = arith.constant 0 : index
    %4 = vector.load %arg3[%c0_3, %c0_4] : memref<64x384xbf16, #tpu.memory_space<vmem>>, vector<64x384xbf16>
    %cst = arith.constant dense<0.000000e+00> : vector<32x384xf32>
    %5 = tpu.matmul %3, %4, %cst {dimension_numbers = #tpu.dot_dimension_numbers<[1], [0], [0], [1], [0, 0, 1, 1], [], []>} : vector<32x64xbf16>, vector<64x384xbf16>, vector<32x384xf32> -> vector<32x384xf32>
    %c0_5 = arith.constant 0 : index
    %c0_6 = arith.constant 0 : index
    %6 = vector.load %arg4[%c0_5, %c0_6] : memref<1x384xf32, #tpu.memory_space<vmem>>, vector<1x384xf32>
    %7 = vector.broadcast %6 : vector<1x384xf32> to vector<32x384xf32>
    %8 = arith.addf %5, %7 : vector<32x384xf32>
    %c0_7 = arith.constant 0 : index
    %c0_8 = arith.constant 0 : index
    %9 = vector.load %arg5[%c0_7, %c0_8] : memref<512x384xbf16, #tpu.memory_space<vmem>>, vector<512x384xbf16>
    %cst_9 = arith.constant dense<0.000000e+00> : vector<16x384xf32>
    %10 = tpu.matmul %2, %9, %cst_9 {dimension_numbers = #tpu.dot_dimension_numbers<[1], [0], [0], [1], [0, 0, 1, 1], [], []>} : vector<16x512xbf16>, vector<512x384xbf16>, vector<16x384xf32> -> vector<16x384xf32>
    %c0_10 = arith.constant 0 : index
    %c0_11 = arith.constant 0 : index
    %11 = vector.load %arg6[%c0_10, %c0_11] : memref<1x384xf32, #tpu.memory_space<vmem>>, vector<1x384xf32>
    %12 = vector.broadcast %11 : vector<1x384xf32> to vector<16x384xf32>
    %13 = arith.addf %10, %12 : vector<16x384xf32>
    %c0_12 = arith.constant 0 : index
    %c0_13 = arith.constant 0 : index
    %14 = vector.load %arg7[%c0_12, %c0_13] : memref<512x64xbf16, #tpu.memory_space<vmem>>, vector<512x64xbf16>
    %cst_14 = arith.constant dense<0.000000e+00> : vector<16x64xf32>
    %15 = tpu.matmul %2, %14, %cst_14 {dimension_numbers = #tpu.dot_dimension_numbers<[1], [0], [0], [1], [0, 0, 1, 1], [], []>} : vector<16x512xbf16>, vector<512x64xbf16>, vector<16x64xf32> -> vector<16x64xf32>
    %c0_15 = arith.constant 0 : index
    %c0_16 = arith.constant 0 : index
    %16 = vector.load %arg8[%c0_15, %c0_16] : memref<1x64xf32, #tpu.memory_space<vmem>>, vector<1x64xf32>
    %17 = vector.broadcast %16 : vector<1x64xf32> to vector<16x64xf32>
    %18 = arith.addf %15, %17 : vector<16x64xf32>
    %19 = vector.extract_strided_slice %8 {offsets = [0, 0], sizes = [16, 384], strides = [1, 1]} : vector<32x384xf32> to vector<16x384xf32>
    %20 = arith.truncf %19 : vector<16x384xf32> to vector<16x384xbf16>
    %21 = vector.extract_strided_slice %13 {offsets = [0, 0], sizes = [8, 384], strides = [1, 1]} : vector<16x384xf32> to vector<8x384xf32>
    %22 = arith.truncf %21 : vector<8x384xf32> to vector<8x384xbf16>
    %23 = vector.extract_strided_slice %18 {offsets = [0, 0], sizes = [8, 64], strides = [1, 1]} : vector<16x64xf32> to vector<8x64xf32>
    %24 = arith.truncf %23 : vector<8x64xf32> to vector<8x64xbf16>
    %cst_17 = arith.constant dense<0.000000e+00> : vector<16x8xf32>
    %25 = tpu.matmul %20, %22, %cst_17 {dimension_numbers = #tpu.dot_dimension_numbers<[1], [1], [0], [0], [0, 0, 1, 0], [], []>} : vector<16x384xbf16>, vector<8x384xbf16>, vector<16x8xf32> -> vector<16x8xf32>
    %cst_18 = arith.constant dense<0xFF800000> : vector<8xf32>
    %26 = vector.multi_reduction <maximumf>, %25, %cst_18 [0] : vector<16x8xf32> to vector<8xf32>
    %27 = vector.shape_cast %26 : vector<8xf32> to vector<1x8xf32>
    %28 = vector.broadcast %27 : vector<1x8xf32> to vector<16x8xf32>
    %29 = arith.subf %25, %28 : vector<16x8xf32>
    %30 = math.exp %29 : vector<16x8xf32>
    %cst_19 = arith.constant dense<0.000000e+00> : vector<8xf32>
    %31 = vector.multi_reduction <add>, %30, %cst_19 [0] : vector<16x8xf32> to vector<8xf32>
    %32 = vector.shape_cast %31 : vector<8xf32> to vector<1x8xf32>
    %33 = tpu.reciprocal %32 {approx = true} : vector<1x8xf32> -> vector<1x8xf32>
    %34 = vector.broadcast %33 : vector<1x8xf32> to vector<16x8xf32>
    %35 = arith.mulf %30, %34 : vector<16x8xf32>
    %36 = arith.truncf %35 : vector<16x8xf32> to vector<16x8xbf16>
    %37 = vector.extract_strided_slice %0 {offsets = [0, 0], sizes = [16, 64], strides = [1, 1]} : vector<32x64xf32> to vector<16x64xf32>
    %cst_20 = arith.constant dense<0.000000e+00> : vector<16x64xf32>
    %38 = tpu.matmul %36, %24, %cst_20 {dimension_numbers = #tpu.dot_dimension_numbers<[1], [0], [0], [1], [0, 0, 1, 1], [], []>} : vector<16x8xbf16>, vector<8x64xbf16>, vector<16x64xf32> -> vector<16x64xf32>
    %39 = arith.addf %37, %38 : vector<16x64xf32>
    %c0_21 = arith.constant 0 : index
    %c0_22 = arith.constant 0 : index
    %40 = vector.load %arg9[%c0_21, %c0_22] : memref<32x64xf32, #tpu.memory_space<vmem>>, vector<16x64xf32>
    tpu.vector_store %arg9[%c0_21, %c0_22], %39 {strides = array<i32>} : memref<32x64xf32, #tpu.memory_space<vmem>>, vector<16x64xf32>,
    %41 = vector.extract_strided_slice %8 {offsets = [16, 0], sizes = [16, 384], strides = [1, 1]} : vector<32x384xf32> to vector<16x384xf32>
    %42 = arith.truncf %41 : vector<16x384xf32> to vector<16x384xbf16>
    %43 = vector.extract_strided_slice %13 {offsets = [8, 0], sizes = [8, 384], strides = [1, 1]} : vector<16x384xf32> to vector<8x384xf32>
    %44 = arith.truncf %43 : vector<8x384xf32> to vector<8x384xbf16>
    %45 = vector.extract_strided_slice %18 {offsets = [8, 0], sizes = [8, 64], strides = [1, 1]} : vector<16x64xf32> to vector<8x64xf32>
    %46 = arith.truncf %45 : vector<8x64xf32> to vector<8x64xbf16>
    %cst_23 = arith.constant dense<0.000000e+00> : vector<16x8xf32>
    %47 = tpu.matmul %42, %44, %cst_23 {dimension_numbers = #tpu.dot_dimension_numbers<[1], [1], [0], [0], [0, 0, 1, 0], [], []>} : vector<16x384xbf16>, vector<8x384xbf16>, vector<16x8xf32> -> vector<16x8xf32>
    %cst_24 = arith.constant dense<0xFF800000> : vector<8xf32>
    %48 = vector.multi_reduction <maximumf>, %47, %cst_24 [0] : vector<16x8xf32> to vector<8xf32>
    %49 = vector.shape_cast %48 : vector<8xf32> to vector<1x8xf32>
    %50 = vector.broadcast %49 : vector<1x8xf32> to vector<16x8xf32>
    %51 = arith.subf %47, %50 : vector<16x8xf32>
    %52 = math.exp %51 : vector<16x8xf32>
    %cst_25 = arith.constant dense<0.000000e+00> : vector<8xf32>
    %53 = vector.multi_reduction <add>, %52, %cst_25 [0] : vector<16x8xf32> to vector<8xf32>
    %54 = vector.shape_cast %53 : vector<8xf32> to vector<1x8xf32>
    %55 = tpu.reciprocal %54 {approx = true} : vector<1x8xf32> -> vector<1x8xf32>
    %56 = vector.broadcast %55 : vector<1x8xf32> to vector<16x8xf32>
    %57 = arith.mulf %52, %56 : vector<16x8xf32>
    %58 = arith.truncf %57 : vector<16x8xf32> to vector<16x8xbf16>
    %59 = vector.extract_strided_slice %0 {offsets = [16, 0], sizes = [16, 64], strides = [1, 1]} : vector<32x64xf32> to vector<16x64xf32>
    %cst_26 = arith.constant dense<0.000000e+00> : vector<16x64xf32>
    %60 = tpu.matmul %58, %46, %cst_26 {dimension_numbers = #tpu.dot_dimension_numbers<[1], [0], [0], [1], [0, 0, 1, 1], [], []>} : vector<16x8xbf16>, vector<8x64xbf16>, vector<16x64xf32> -> vector<16x64xf32>
    %61 = arith.addf %59, %60 : vector<16x64xf32>
    %c16 = arith.constant 16 : index
    %c0_27 = arith.constant 0 : index
    %62 = vector.load %arg9[%c16, %c0_27] : memref<32x64xf32, #tpu.memory_space<vmem>>, vector<16x64xf32>
    tpu.vector_store %arg9[%c16, %c0_27], %61 {strides = array<i32>} : memref<32x64xf32, #tpu.memory_space<vmem>>, vector<16x64xf32>,
    return
  }
  func.func @transform_0(%arg0: i32) -> (i32, i32) {
    %c0_i32 = arith.constant 0 : i32
    %c0_i32_0 = arith.constant 0 : i32
    return %arg0, %c0_i32 : i32, i32
  }
  func.func @transform_1(%arg0: i32) -> (i32, i32) {
    %c0_i32 = arith.constant 0 : i32
    %c0_i32_0 = arith.constant 0 : i32
    return %arg0, %c0_i32 : i32, i32
  }
  func.func @transform_2(%arg0: i32) -> (i32, i32) {
    %c0_i32 = arith.constant 0 : i32
    %c0_i32_0 = arith.constant 0 : i32
    %c0_i32_1 = arith.constant 0 : i32
    return %c0_i32, %c0_i32_0 : i32, i32
  }
  func.func @transform_3(%arg0: i32) -> (i32, i32) {
    %c0_i32 = arith.constant 0 : i32
    %c0_i32_0 = arith.constant 0 : i32
    %c0_i32_1 = arith.constant 0 : i32
    return %c0_i32, %c0_i32_0 : i32, i32
  }
  func.func @transform_4(%arg0: i32) -> (i32, i32) {
    %c0_i32 = arith.constant 0 : i32
    %c0_i32_0 = arith.constant 0 : i32
    %c0_i32_1 = arith.constant 0 : i32
    return %c0_i32, %c0_i32_0 : i32, i32
  }
  func.func @transform_5(%arg0: i32) -> (i32, i32) {
    %c0_i32 = arith.constant 0 : i32
    %c0_i32_0 = arith.constant 0 : i32
    %c0_i32_1 = arith.constant 0 : i32
    return %c0_i32, %c0_i32_0 : i32, i32
  }
  func.func @transform_6(%arg0: i32) -> (i32, i32) {
    %c0_i32 = arith.constant 0 : i32
    %c0_i32_0 = arith.constant 0 : i32
    %c0_i32_1 = arith.constant 0 : i32
    return %c0_i32, %c0_i32_0 : i32, i32
  }
  func.func @transform_7(%arg0: i32) -> (i32, i32) {
    %c0_i32 = arith.constant 0 : i32
    %c0_i32_0 = arith.constant 0 : i32
    %c0_i32_1 = arith.constant 0 : i32
    return %c0_i32, %c0_i32_0 : i32, i32
  }
  func.func @transform_8(%arg0: i32) -> (i32, i32) {
    %c0_i32 = arith.constant 0 : i32
    %c0_i32_0 = arith.constant 0 : i32
    return %arg0, %c0_i32 : i32, i32
  }
}

</mosaic_0001>

<llo_original>
// kernel: token_proj_forward.1
$region0: #{token_proj_forward.1}
  #allocation0 [shape = 'u32[]', space=smem, size = 0x4, offset = 0x4, fixed_abs, tag = 'smem constant byte address 0x4 - core index']
  #allocation1 [shape = 'u32[144,128]{1,0:T(1,128)}', space=vmem, size = 0x12000, scoped, tag = 'internal scratch']
  %s0 = inlined_call_operand.vmem [shape: f32[32,64], index: 0, kind: input, shape index: {}]
  %s1 = inlined_call_operand.vmem [shape: f32[16,512], index: 1, kind: input, shape index: {}]
  %s2 = inlined_call_operand.vmem [shape: bf16[64,384], index: 2, kind: input, shape index: {}]
  %s3 = inlined_call_operand.vmem [shape: f32[1,384], index: 3, kind: input, shape index: {}]
  %s4 = inlined_call_operand.hbm [shape: bf16[512,384], index: 4, kind: input, shape index: {}]
  %s5 = inlined_call_operand.vmem [shape: f32[1,384], index: 5, kind: input, shape index: {}]
  %s6 = inlined_call_operand.vmem [shape: bf16[512,64], index: 6, kind: input, shape index: {}]
  %s7 = inlined_call_operand.vmem [shape: f32[1,64], index: 7, kind: input, shape index: {}]
  %s8 = inlined_call_operand.hbm [shape: f32[32,64], index: 8, kind: output, shape index: {}]
  %s9 = sld [smem:[#allocation0]]
  $region46: #{token_proj_forward.1} parent=0
    _
  %s11 = ssub.s32 1, %s9
  %s12 = scalar_select 0, %s11, %s9
  $region1: #{token_proj_forward.1} parent=0
    #allocation2 [shape = 'u8[393216]{0}', space=vmem, size = 0x60000, scoped, tag = 'input window, operand 4, single buffered']
    #allocation3 [shape = 's32[1]{0}', space=sflag, size = 0x4, scoped, tag = 'scoped memory for token_proj_forward.1']
    #allocation4 [shape = 's32[1]{0}', space=sflag, size = 0x4, scoped, tag = 'scoped memory for token_proj_forward.1']
    #allocation5 [shape = 'u8[16384]{0}', space=vmem, size = 0x4000, scoped, tag = 'output window, operand 0, single buffered']
    %13 = vsyncpa [#allocation3], 0
    %14 = vsyncpa [#allocation4], 0
    // Predicated region
    $region2: #{token_proj_forward.1} parent=1 // pred_check
      _
    $region3: #{token_proj_forward.1} parent=1 // pred_check_branch
      %16 = sbr.rel (0) target = $region5
    $region4: #{token_proj_forward.1} parent=1 // pred_region
      _
    $region5: #{token_proj_forward.1} parent=1 // pred_fallthru
      _
    // Predicated region
    $region6: #{token_proj_forward.1} parent=1 // pred_check
      _
    $region7: #{token_proj_forward.1} parent=1 // pred_check_branch
      %18 = sbr.rel (0) target = $region9
    $region8: #{token_proj_forward.1} parent=1 // pred_region
      _
    $region9: #{token_proj_forward.1} parent=1 // pred_fallthru
      _
    // Predicated region
    $region10: #{token_proj_forward.1} parent=1 // pred_check
      _
    $region11: #{token_proj_forward.1} parent=1 // pred_check_branch
      %20 = sbr.rel (0) target = $region13
    $region12: #{token_proj_forward.1} parent=1 // pred_region
      _
    $region13: #{token_proj_forward.1} parent=1 // pred_fallthru
      _
    // Predicated region
    $region14: #{token_proj_forward.1} parent=1 // pred_check
      _
    $region15: #{token_proj_forward.1} parent=1 // pred_check_branch
      %22 = sbr.rel (0) target = $region17
    $region16: #{token_proj_forward.1} parent=1 // pred_region
      _
    $region17: #{token_proj_forward.1} parent=1 // pred_fallthru
      _
    // Predicated region
    $region18: #{token_proj_forward.1} parent=1 // pred_check
      _
    $region19: #{token_proj_forward.1} parent=1 // pred_check_branch
      %24 = sbr.rel (0) target = $region21
    $region20: #{token_proj_forward.1} parent=1 // pred_region
      %s26 = ssub.s32 12288, 12288
      %27 = vsyncadd [#allocation3], %s26
      %s28 = sshll.u32 [#allocation2], 4
      %s29 = int_to_ptr.vmem [resolvable:$true] %s28
      %34 = dma.hbm_to_vmem [thread:$0]  %s4, 12288, %s29, [#allocation3], 192, 192, 12
    $region21: #{token_proj_forward.1} parent=1 // pred_fallthru
      _
    // Predicated region
    $region22: #{token_proj_forward.1} parent=1 // pred_check
      _
    $region23: #{token_proj_forward.1} parent=1 // pred_check_branch
      %36 = sbr.rel (0) target = $region25
    $region24: #{token_proj_forward.1} parent=1 // pred_region
      _
    $region25: #{token_proj_forward.1} parent=1 // pred_fallthru
      _
    // Predicated region
    $region26: #{token_proj_forward.1} parent=1 // pred_check
      _
    $region27: #{token_proj_forward.1} parent=1 // pred_check_branch
      %38 = sbr.rel (0) target = $region29
    $region28: #{token_proj_forward.1} parent=1 // pred_region
      _
    $region29: #{token_proj_forward.1} parent=1 // pred_fallthru
      _
    // Predicated region
    $region30: #{token_proj_forward.1} parent=1 // pred_check
      _
    $region31: #{token_proj_forward.1} parent=1 // pred_check_branch
      %40 = sbr.rel (0) target = $region33
    $region32: #{token_proj_forward.1} parent=1 // pred_region
      _
    $region33: #{token_proj_forward.1} parent=1 // pred_fallthru
      _
    // Predicated region
    $region34: #{token_proj_forward.1} parent=1 // pred_check
      _
    $region35: #{token_proj_forward.1} parent=1 // pred_check_branch
      %42 = sbr.rel (0) target = $region37
    $region36: #{token_proj_forward.1} parent=1 // pred_region
      %43 = dma.done [#allocation3], 12288
    $region37: #{token_proj_forward.1} parent=1 // pred_fallthru
      _
    %v45 = vld [vmem:[%s0] sm:$0xff]
    %v46 = vld [vmem:[%s0 + $0x8] sm:$0xff]
    %v47 = vld [vmem:[%s0 + $0x10] sm:$0xff]
    %v48 = vld [vmem:[%s0 + $0x18] sm:$0xff]
    %v49 = vld [vmem:[%s1] sm:$0xff]
    %v50 = vld [vmem:[%s1 + $0x8] sm:$0xff]
    %v51 = vld [vmem:[%s1 + $0x10] sm:$0xff]
    %v52 = vld [vmem:[%s1 + $0x18] sm:$0xff]
    %v53 = vld [vmem:[%s1 + $0x20] sm:$0xff]
    %v54 = vld [vmem:[%s1 + $0x28] sm:$0xff]
    %v55 = vld [vmem:[%s1 + $0x30] sm:$0xff]
    %v56 = vld [vmem:[%s1 + $0x38] sm:$0xff]
    %v57 = vpack.c.bf16 %v53, %v49
    %v58 = vpack.c.bf16 %v54, %v50
    %v59 = vpack.c.bf16 %v55, %v51
    %v60 = vpack.c.bf16 %v56, %v52
    %v61 = vpack.c.bf16 %v46, %v45
    %v62 = vpack.c.bf16 %v48, %v47
    %v63 = vld [vmem:[%s2] sm:$0xff]
    %v64 = vld [vmem:[%s2 + $0x8] sm:$0xf]
    %v65 = vld [vmem:[%s2 + $0xc] sm:$0xff]
    %v66 = vld [vmem:[%s2 + $0x14] sm:$0xf]
    %v67 = vld [vmem:[%s2 + $0x18] sm:$0xff]
    %v68 = vld [vmem:[%s2 + $0x20] sm:$0xf]
    %v69 = vld [vmem:[%s2 + $0x24] sm:$0xff]
    %v70 = vld [vmem:[%s2 + $0x2c] sm:$0xf]
    %v71 = vld [vmem:[%s2 + $0x30] sm:$0xff]
    %v72 = vld [vmem:[%s2 + $0x38] sm:$0xf]
    %v73 = vld [vmem:[%s2 + $0x3c] sm:$0xff]
    %v74 = vld [vmem:[%s2 + $0x44] sm:$0xf]
    %v75 = vld [vmem:[%s2 + $0x48] sm:$0xff]
    %v76 = vld [vmem:[%s2 + $0x50] sm:$0xf]
    %v77 = vld [vmem:[%s2 + $0x54] sm:$0xff]
    %v78 = vld [vmem:[%s2 + $0x5c] sm:$0xf]
    %v79 = vld [vmem:[%s3] sm:$0x7]
    %v81 = vlaneseq
    %v82 = vshrl.u32 %v81, 7
    %v83 = vsub.s32 0, %v82
    %v84 = vrot.slane %v79, %v83
    %v85 = vlaneseq
    %v86 = vshrl.u32 %v85, 7
    %v87 = vsub.s32 1, %v86
    %v88 = vrot.slane %v79, %v87
    %v89 = vlaneseq
    %v90 = vshrl.u32 %v89, 7
    %v91 = vsub.s32 2, %v90
    %v92 = vrot.slane %v79, %v91
    %v112 = vunpack.c.l.b16 %v63
    %v113 = vunpack.c.h.b16 %v63
    %v114 = vunpack.c.l.b16 %v64
    %v115 = vunpack.c.l.b16 %v65
    %v116 = vunpack.c.h.b16 %v65
    %v117 = vunpack.c.l.b16 %v66
    %v118 = vunpack.c.l.b16 %v67
    %v119 = vunpack.c.h.b16 %v67
    %v120 = vunpack.c.l.b16 %v68
    %v121 = vunpack.c.l.b16 %v69
    %v122 = vunpack.c.h.b16 %v69
    %v123 = vunpack.c.l.b16 %v70
    %v124 = vunpack.c.l.b16 %v71
    %v125 = vunpack.c.h.b16 %v71
    %v126 = vunpack.c.l.b16 %v72
    %v127 = vunpack.c.l.b16 %v73
    %v128 = vunpack.c.h.b16 %v73
    %v129 = vunpack.c.l.b16 %v74
    %v130 = vunpack.c.l.b16 %v75
    %v131 = vunpack.c.h.b16 %v75
    %v132 = vunpack.c.l.b16 %v76
    %v133 = vunpack.c.l.b16 %v77
    %v134 = vunpack.c.h.b16 %v77
    %v135 = vunpack.c.l.b16 %v78
    %v136 = vpack.c.b16 %v115, %v112
    %v137 = vpack.c.b16 %v116, %v113
    %v138 = vpack.c.b16 %v117, %v114
    %v139 = vpack.c.b16 %v121, %v118
    %v140 = vpack.c.b16 %v122, %v119
    %v141 = vpack.c.b16 %v123, %v120
    %v142 = vpack.c.b16 %v127, %v124
    %v143 = vpack.c.b16 %v128, %v125
    %v144 = vpack.c.b16 %v129, %v126
    %v145 = vpack.c.b16 %v133, %v130
    %v146 = vpack.c.b16 %v134, %v131
    %v147 = vpack.c.b16 %v135, %v132
    %vm160 = vcmask 523264
    %v162 = vsel %vm160, %v61, 0
    %v165 = vsel %vm160, %v62, 0
    %167 = vmatprep.subr.bf16.mxu0 %v137
    %168 = vmatpush1.bf16.msra.mxu0 %v136
    %169 = vmatprep.subr.bf16.mxu0 %v140
    %170 = vmatpush1.bf16.msra.mxu0 %v139
    %171 = vmatprep.subr.bf16.mxu0 %v143
    %172 = vmatpush1.bf16.msra.mxu0 %v142
    %173 = vmatprep.subr.bf16.mxu0 %v146
    %174 = vmatpush1.bf16.msra.mxu0 %v145
    %175 = vmatprep.subr.bf16.mxu0 0
    %176 = vmatpush1.bf16.msra.mxu0 0
    %177 = vmatprep.subr.bf16.mxu0 0
    %178 = vmatpush1.bf16.msra.mxu0 0
    %179 = vmatprep.subr.bf16.mxu0 0
    %180 = vmatpush1.bf16.msra.mxu0 0
    %181 = vmatprep.subr.bf16.mxu0 0
    %182 = vmatpush1.bf16.msra.mxu0 0
    %183 = vmatprep.subr.bf16.mxu0 0
    %184 = vmatpush1.bf16.msra.mxu0 0
    %185 = vmatprep.subr.bf16.mxu0 0
    %186 = vmatpush1.bf16.msra.mxu0 0
    %187 = vmatprep.subr.bf16.mxu0 0
    %188 = vmatpush1.bf16.msra.mxu0 0
    %189 = vmatprep.subr.bf16.mxu0 0
    %190 = vmatpush1.bf16.msra.mxu0 0
    %191 = vmatprep.subr.bf16.mxu0 0
    %192 = vmatpush1.bf16.msra.mxu0 0
    %193 = vmatprep.subr.bf16.mxu0 0
    %194 = vmatpush1.bf16.msra.mxu0 0
    %195 = vmatprep.subr.bf16.mxu0 0
    %196 = vmatpush1.bf16.msra.mxu0 0
    %197 = vmatprep.subr.bf16.mxu0 0
    %198 = vmatpush1.bf16.msra.mxu0 0
    %199 = vmatprep.mubr.bf16.mxu0 0
    %200 = vmatmul.mubr.bf16.gmra.mrb[0].mxu0 %v162
    %v201 = vpop.f32.mrb[0].mxu0
    %v202 = vadd.f32 %v84, %v201
    %v203 = vpop.f32.mrb[0].mxu0
    %v204 = vadd.f32 %v88, %v203
    %v205 = vpop.f32.mrb[0].mxu0
    %v206 = vadd.f32 %v84, %v205
    %v207 = vpop.f32.mrb[0].mxu0
    %v208 = vadd.f32 %v88, %v207
    %209 = vmatprep.mubr.bf16.mxu0 0
    %210 = vmatmul.mubr.bf16.gmra.mrb[0].mxu0 %v165
    %v211 = vpop.f32.mrb[0].mxu0
    %v212 = vadd.f32 %v84, %v211
    %v213 = vpop.f32.mrb[0].mxu0
    %v214 = vadd.f32 %v88, %v213
    %v215 = vpop.f32.mrb[0].mxu0
    %v216 = vadd.f32 %v84, %v215
    %v217 = vpop.f32.mrb[0].mxu0
    %v218 = vadd.f32 %v88, %v217
    %219 = vdwg.mxu0
    %220 = vmatprep.subr.bf16.mxu0 0
    %221 = vmatpush1.bf16.msra.mxu0 %v138
    %222 = vmatprep.subr.bf16.mxu0 0
    %223 = vmatpush1.bf16.msra.mxu0 %v141
    %224 = vmatprep.subr.bf16.mxu0 0
    %225 = vmatpush1.bf16.msra.mxu0 %v144
    %226 = vmatprep.subr.bf16.mxu0 0
    %227 = vmatpush1.bf16.msra.mxu0 %v147
    %228 = vmatprep.subr.bf16.mxu0 0
    %229 = vmatpush1.bf16.msra.mxu0 0
    %230 = vmatprep.subr.bf16.mxu0 0
    %231 = vmatpush1.bf16.msra.mxu0 0
    %232 = vmatprep.subr.bf16.mxu0 0
    %233 = vmatpush1.bf16.msra.mxu0 0
    %234 = vmatprep.subr.bf16.mxu0 0
    %235 = vmatpush1.bf16.msra.mxu0 0
    %236 = vmatprep.subr.bf16.mxu0 0
    %237 = vmatpush1.bf16.msra.mxu0 0
    %238 = vmatprep.subr.bf16.mxu0 0
    %239 = vmatpush1.bf16.msra.mxu0 0
    %240 = vmatprep.subr.bf16.mxu0 0
    %241 = vmatpush1.bf16.msra.mxu0 0
    %242 = vmatprep.subr.bf16.mxu0 0
    %243 = vmatpush1.bf16.msra.mxu0 0
    %244 = vmatprep.subr.bf16.mxu0 0
    %245 = vmatpush1.bf16.msra.mxu0 0
    %246 = vmatprep.subr.bf16.mxu0 0
    %247 = vmatpush1.bf16.msra.mxu0 0
    %248 = vmatprep.subr.bf16.mxu0 0
    %249 = vmatpush1.bf16.msra.mxu0 0
    %250 = vmatprep.subr.bf16.mxu0 0
    %251 = vmatpush1.bf16.msra.mxu0 0
    %252 = vmatprep.mubr.bf16.mxu0 0
    %253 = vmatmul.mubr.bf16.gmra.mrb[0].mxu0 %v162
    %v254 = vpop.f32.mrb[0].mxu0
    %v255 = vadd.f32 %v92, %v254
    %v256 = vpop.f32.mrb[0].mxu0
    %v257 = vpop.f32.mrb[0].mxu0
    %v258 = vadd.f32 %v92, %v257
    %v259 = vpop.f32.mrb[0].mxu0
    %260 = vmatprep.mubr.bf16.mxu0 0
    %261 = vmatmul.mubr.bf16.gmra.mrb[0].mxu0 %v165
    %v262 = vpop.f32.mrb[0].mxu0
    %v263 = vadd.f32 %v92, %v262
    %v264 = vpop.f32.mrb[0].mxu0
    %v265 = vpop.f32.mrb[0].mxu0
    %v266 = vadd.f32 %v92, %v265
    %v267 = vpop.f32.mrb[0].mxu0
    %268 = vdwg.mxu0
    %v269 = vld [vmem:[#allocation2] sm:$0xff]
    %v270 = vld [vmem:[#allocation2 + $0x8] sm:$0xf]
    %v271 = vld [vmem:[#allocation2 + $0xc] sm:$0xff]
    %v272 = vld [vmem:[#allocation2 + $0x14] sm:$0xf]
    %v273 = vld [vmem:[#allocation2 + $0x18] sm:$0xff]
    %v274 = vld [vmem:[#allocation2 + $0x20] sm:$0xf]
    %v275 = vld [vmem:[#allocation2 + $0x24] sm:$0xff]
    %v276 = vld [vmem:[#allocation2 + $0x2c] sm:$0xf]
    %v277 = vld [vmem:[#allocation2 + $0x30] sm:$0xff]
    %v278 = vld [vmem:[#allocation2 + $0x38] sm:$0xf]
    %v279 = vld [vmem:[#allocation2 + $0x3c] sm:$0xff]
    %v280 = vld [vmem:[#allocation2 + $0x44] sm:$0xf]
    %v281 = vld [vmem:[#allocation2 + $0x48] sm:$0xff]
    %v282 = vld [vmem:[#allocation2 + $0x50] sm:$0xf]
    %v283 = vld [vmem:[#allocation2 + $0x54] sm:$0xff]
    %v284 = vld [vmem:[#allocation2 + $0x5c] sm:$0xf]
    %v285 = vld [vmem:[#allocation2 + $0x60] sm:$0xff]
    %v286 = vld [vmem:[#allocation2 + $0x68] sm:$0xf]
    %v287 = vld [vmem:[#allocation2 + $0x6c] sm:$0xff]
    %v288 = vld [vmem:[#allocation2 + $0x74] sm:$0xf]
    %v289 = vld [vmem:[#allocation2 + $0x78] sm:$0xff]
    %v290 = vld [vmem:[#allocation2 + $0x80] sm:$0xf]
    %v291 = vld [vmem:[#allocation2 + $0x84] sm:$0xff]
    %v292 = vld [vmem:[#allocation2 + $0x8c] sm:$0xf]
    %v293 = vld [vmem:[#allocation2 + $0x90] sm:$0xff]
    %v294 = vld [vmem:[#allocation2 + $0x98] sm:$0xf]
    %v295 = vld [vmem:[#allocation2 + $0x9c] sm:$0xff]
    %v296 = vld [vmem:[#allocation2 + $0xa4] sm:$0xf]
    %v297 = vld [vmem:[#allocation2 + $0xa8] sm:$0xff]
    %v298 = vld [vmem:[#allocation2 + $0xb0] sm:$0xf]
    %v299 = vld [vmem:[#allocation2 + $0xb4] sm:$0xff]
    %v300 = vld [vmem:[#allocation2 + $0xbc] sm:$0xf]
    %v301 = vld [vmem:[#allocation2 + $0xc0] sm:$0xff]
    %v302 = vld [vmem:[#allocation2 + $0xc8] sm:$0xf]
    %v303 = vld [vmem:[#allocation2 + $0xcc] sm:$0xff]
    %v304 = vld [vmem:[#allocation2 + $0xd4] sm:$0xf]
    %v305 = vld [vmem:[#allocation2 + $0xd8] sm:$0xff]
    %v306 = vld [vmem:[#allocation2 + $0xe0] sm:$0xf]
    %v307 = vld [vmem:[#allocation2 + $0xe4] sm:$0xff]
    %v308 = vld [vmem:[#allocation2 + $0xec] sm:$0xf]
    %v309 = vld [vmem:[#allocation2 + $0xf0] sm:$0xff]
    %v310 = vld [vmem:[#allocation2 + $0xf8] sm:$0xf]
    %v311 = vld [vmem:[#allocation2 + $0xfc] sm:$0xff]
    %v312 = vld [vmem:[#allocation2 + $0x104] sm:$0xf]
    %v313 = vld [vmem:[#allocation2 + $0x108] sm:$0xff]
    %v314 = vld [vmem:[#allocation2 + $0x110] sm:$0xf]
    %v315 = vld [vmem:[#allocation2 + $0x114] sm:$0xff]
    %v316 = vld [vmem:[#allocation2 + $0x11c] sm:$0xf]
    %v317 = vld [vmem:[#allocation2 + $0x120] sm:$0xff]
    %v318 = vld [vmem:[#allocation2 + $0x128] sm:$0xf]
    %v319 = vld [vmem:[#allocation2 + $0x12c] sm:$0xff]
    %v320 = vld [vmem:[#allocation2 + $0x134] sm:$0xf]
    %v321 = vld [vmem:[#allocation2 + $0x138] sm:$0xff]
    %v322 = vld [vmem:[#allocation2 + $0x140] sm:$0xf]
    %v323 = vld [vmem:[#allocation2 + $0x144] sm:$0xff]
    %v324 = vld [vmem:[#allocation2 + $0x14c] sm:$0xf]
    %v325 = vld [vmem:[#allocation2 + $0x150] sm:$0xff]
    %v326 = vld [vmem:[#allocation2 + $0x158] sm:$0xf]
    %v327 = vld [vmem:[#allocation2 + $0x15c] sm:$0xff]
    %v328 = vld [vmem:[#allocation2 + $0x164] sm:$0xf]
    %v329 = vld [vmem:[#allocation2 + $0x168] sm:$0xff]
    %v330 = vld [vmem:[#allocation2 + $0x170] sm:$0xf]
    %v331 = vld [vmem:[#allocation2 + $0x174] sm:$0xff]
    %v332 = vld [vmem:[#allocation2 + $0x17c] sm:$0xf]
    %v333 = vld [vmem:[#allocation2 + $0x180] sm:$0xff]
    %v334 = vld [vmem:[#allocation2 + $0x188] sm:$0xf]
    %v335 = vld [vmem:[#allocation2 + $0x18c] sm:$0xff]
    %v336 = vld [vmem:[#allocation2 + $0x194] sm:$0xf]
    %v337 = vld [vmem:[#allocation2 + $0x198] sm:$0xff]
    %v338 = vld [vmem:[#allocation2 + $0x1a0] sm:$0xf]
    %v339 = vld [vmem:[#allocation2 + $0x1a4] sm:$0xff]
    %v340 = vld [vmem:[#allocation2 + $0x1ac] sm:$0xf]
    %v341 = vld [vmem:[#allocation2 + $0x1b0] sm:$0xff]
    %v342 = vld [vmem:[#allocation2 + $0x1b8] sm:$0xf]
    %v343 = vld [vmem:[#allocation2 + $0x1bc] sm:$0xff]
    %v344 = vld [vmem:[#allocation2 + $0x1c4] sm:$0xf]
    %v345 = vld [vmem:[#allocation2 + $0x1c8] sm:$0xff]
    %v346 = vld [vmem:[#allocation2 + $0x1d0] sm:$0xf]
    %v347 = vld [vmem:[#allocation2 + $0x1d4] sm:$0xff]
    %v348 = vld [vmem:[#allocation2 + $0x1dc] sm:$0xf]
    %v349 = vld [vmem:[#allocation2 + $0x1e0] sm:$0xff]
    %v350 = vld [vmem:[#allocation2 + $0x1e8] sm:$0xf]
    %v351 = vld [vmem:[#allocation2 + $0x1ec] sm:$0xff]
    %v352 = vld [vmem:[#allocation2 + $0x1f4] sm:$0xf]
    %v353 = vld [vmem:[#allocation2 + $0x1f8] sm:$0xff]
    %v354 = vld [vmem:[#allocation2 + $0x200] sm:$0xf]
    %v355 = vld [vmem:[#allocation2 + $0x204] sm:$0xff]
    %v356 = vld [vmem:[#allocation2 + $0x20c] sm:$0xf]
    %v357 = vld [vmem:[#allocation2 + $0x210] sm:$0xff]
    %v358 = vld [vmem:[#allocation2 + $0x218] sm:$0xf]
    %v359 = vld [vmem:[#allocation2 + $0x21c] sm:$0xff]
    %v360 = vld [vmem:[#allocation2 + $0x224] sm:$0xf]
    %v361 = vld [vmem:[#allocation2 + $0x228] sm:$0xff]
    %v362 = vld [vmem:[#allocation2 + $0x230] sm:$0xf]
    %v363 = vld [vmem:[#allocation2 + $0x234] sm:$0xff]
    %v364 = vld [vmem:[#allocation2 + $0x23c] sm:$0xf]
    %v365 = vld [vmem:[#allocation2 + $0x240] sm:$0xff]
    %v366 = vld [vmem:[#allocation2 + $0x248] sm:$0xf]
    %v367 = vld [vmem:[#allocation2 + $0x24c] sm:$0xff]
    %v368 = vld [vmem:[#allocation2 + $0x254] sm:$0xf]
    %v369 = vld [vmem:[#allocation2 + $0x258] sm:$0xff]
    %v370 = vld [vmem:[#allocation2 + $0x260] sm:$0xf]
    %v371 = vld [vmem:[#allocation2 + $0x264] sm:$0xff]
    %v372 = vld [vmem:[#allocation2 + $0x26c] sm:$0xf]
    %v373 = vld [vmem:[#allocation2 + $0x270] sm:$0xff]
    %v374 = vld [vmem:[#allocation2 + $0x278] sm:$0xf]
    %v375 = vld [vmem:[#allocation2 + $0x27c] sm:$0xff]
    %v376 = vld [vmem:[#allocation2 + $0x284] sm:$0xf]
    %v377 = vld [vmem:[#allocation2 + $0x288] sm:$0xff]
    %v378 = vld [vmem:[#allocation2 + $0x290] sm:$0xf]
    %v379 = vld [vmem:[#allocation2 + $0x294] sm:$0xff]
    %v380 = vld [vmem:[#allocation2 + $0x29c] sm:$0xf]
    %v381 = vld [vmem:[#allocation2 + $0x2a0] sm:$0xff]
    %v382 = vld [vmem:[#allocation2 + $0x2a8] sm:$0xf]
    %v383 = vld [vmem:[#allocation2 + $0x2ac] sm:$0xff]
    %v384 = vld [vmem:[#allocation2 + $0x2b4] sm:$0xf]
    %v385 = vld [vmem:[#allocation2 + $0x2b8] sm:$0xff]
    %v386 = vld [vmem:[#allocation2 + $0x2c0] sm:$0xf]
    %v387 = vld [vmem:[#allocation2 + $0x2c4] sm:$0xff]
    %v388 = vld [vmem:[#allocation2 + $0x2cc] sm:$0xf]
    %v389 = vld [vmem:[#allocation2 + $0x2d0] sm:$0xff]
    %v390 = vld [vmem:[#allocation2 + $0x2d8] sm:$0xf]
    %v391 = vld [vmem:[#allocation2 + $0x2dc] sm:$0xff]
    %v392 = vld [vmem:[#allocation2 + $0x2e4] sm:$0xf]
    %v393 = vld [vmem:[#allocation2 + $0x2e8] sm:$0xff]
    %v394 = vld [vmem:[#allocation2 + $0x2f0] sm:$0xf]
    %v395 = vld [vmem:[#allocation2 + $0x2f4] sm:$0xff]
    %v396 = vld [vmem:[#allocation2 + $0x2fc] sm:$0xf]
    %v397 = vld [vmem:[%s5] sm:$0x7]
    %v399 = vlaneseq
    %v400 = vshrl.u32 %v399, 7
    %v401 = vsub.s32 0, %v400
    %v402 = vrot.slane %v397, %v401
    %v403 = vlaneseq
    %v404 = vshrl.u32 %v403, 7
    %v405 = vsub.s32 1, %v404
    %v406 = vrot.slane %v397, %v405
    %v407 = vlaneseq
    %v408 = vshrl.u32 %v407, 7
    %v409 = vsub.s32 2, %v408
    %v410 = vrot.slane %v397, %v409
    %v542 = vunpack.c.l.b16 %v269
    %v543 = vunpack.c.h.b16 %v269
    %v544 = vunpack.c.l.b16 %v270
    %v545 = vunpack.c.l.b16 %v271
    %v546 = vunpack.c.h.b16 %v271
    %v547 = vunpack.c.l.b16 %v272
    %v548 = vunpack.c.l.b16 %v273
    %v549 = vunpack.c.h.b16 %v273
    %v550 = vunpack.c.l.b16 %v274
    %v551 = vunpack.c.l.b16 %v275
    %v552 = vunpack.c.h.b16 %v275
    %v553 = vunpack.c.l.b16 %v276
    %v554 = vunpack.c.l.b16 %v277
    %v555 = vunpack.c.h.b16 %v277
    %v556 = vunpack.c.l.b16 %v278
    %v557 = vunpack.c.l.b16 %v279
    %v558 = vunpack.c.h.b16 %v279
    %v559 = vunpack.c.l.b16 %v280
    %v560 = vunpack.c.l.b16 %v281
    %v561 = vunpack.c.h.b16 %v281
    %v562 = vunpack.c.l.b16 %v282
    %v563 = vunpack.c.l.b16 %v283
    %v564 = vunpack.c.h.b16 %v283
    %v565 = vunpack.c.l.b16 %v284
    %v566 = vunpack.c.l.b16 %v285
    %v567 = vunpack.c.h.b16 %v285
    %v568 = vunpack.c.l.b16 %v286
    %v569 = vunpack.c.l.b16 %v287
    %v570 = vunpack.c.h.b16 %v287
    %v571 = vunpack.c.l.b16 %v288
    %v572 = vunpack.c.l.b16 %v289
    %v573 = vunpack.c.h.b16 %v289
    %v574 = vunpack.c.l.b16 %v290
    %v575 = vunpack.c.l.b16 %v291
    %v576 = vunpack.c.h.b16 %v291
    %v577 = vunpack.c.l.b16 %v292
    %v578 = vunpack.c.l.b16 %v293
    %v579 = vunpack.c.h.b16 %v293
    %v580 = vunpack.c.l.b16 %v294
    %v581 = vunpack.c.l.b16 %v295
    %v582 = vunpack.c.h.b16 %v295
    %v583 = vunpack.c.l.b16 %v296
    %v584 = vunpack.c.l.b16 %v297
    %v585 = vunpack.c.h.b16 %v297
    %v586 = vunpack.c.l.b16 %v298
    %v587 = vunpack.c.l.b16 %v299
    %v588 = vunpack.c.h.b16 %v299
    %v589 = vunpack.c.l.b16 %v300
    %v590 = vunpack.c.l.b16 %v301
    %v591 = vunpack.c.h.b16 %v301
    %v592 = vunpack.c.l.b16 %v302
    %v593 = vunpack.c.l.b16 %v303
    %v594 = vunpack.c.h.b16 %v303
    %v595 = vunpack.c.l.b16 %v304
    %v596 = vunpack.c.l.b16 %v305
    %v597 = vunpack.c.h.b16 %v305
    %v598 = vunpack.c.l.b16 %v306
    %v599 = vunpack.c.l.b16 %v307
    %v600 = vunpack.c.h.b16 %v307
    %v601 = vunpack.c.l.b16 %v308
    %v602 = vunpack.c.l.b16 %v309
    %v603 = vunpack.c.h.b16 %v309
    %v604 = vunpack.c.l.b16 %v310
    %v605 = vunpack.c.l.b16 %v311
    %v606 = vunpack.c.h.b16 %v311
    %v607 = vunpack.c.l.b16 %v312
    %v608 = vunpack.c.l.b16 %v313
    %v609 = vunpack.c.h.b16 %v313
    %v610 = vunpack.c.l.b16 %v314
    %v611 = vunpack.c.l.b16 %v315
    %v612 = vunpack.c.h.b16 %v315
    %v613 = vunpack.c.l.b16 %v316
    %v614 = vunpack.c.l.b16 %v317
    %v615 = vunpack.c.h.b16 %v317
    %v616 = vunpack.c.l.b16 %v318
    %v617 = vunpack.c.l.b16 %v319
    %v618 = vunpack.c.h.b16 %v319
    %v619 = vunpack.c.l.b16 %v320
    %v620 = vunpack.c.l.b16 %v321
    %v621 = vunpack.c.h.b16 %v321
    %v622 = vunpack.c.l.b16 %v322
    %v623 = vunpack.c.l.b16 %v323
    %v624 = vunpack.c.h.b16 %v323
    %v625 = vunpack.c.l.b16 %v324
    %v626 = vunpack.c.l.b16 %v325
    %v627 = vunpack.c.h.b16 %v325
    %v628 = vunpack.c.l.b16 %v326
    %v629 = vunpack.c.l.b16 %v327
    %v630 = vunpack.c.h.b16 %v327
    %v631 = vunpack.c.l.b16 %v328
    %v632 = vunpack.c.l.b16 %v329
    %v633 = vunpack.c.h.b16 %v329
    %v634 = vunpack.c.l.b16 %v330
    %v635 = vunpack.c.l.b16 %v331
    %v636 = vunpack.c.h.b16 %v331
    %v637 = vunpack.c.l.b16 %v332
    %v638 = vunpack.c.l.b16 %v333
    %v639 = vunpack.c.h.b16 %v333
    %v640 = vunpack.c.l.b16 %v334
    %v641 = vunpack.c.l.b16 %v335
    %v642 = vunpack.c.h.b16 %v335
    %v643 = vunpack.c.l.b16 %v336
    %v644 = vunpack.c.l.b16 %v337
    %v645 = vunpack.c.h.b16 %v337
    %v646 = vunpack.c.l.b16 %v338
    %v647 = vunpack.c.l.b16 %v339
    %v648 = vunpack.c.h.b16 %v339
    %v649 = vunpack.c.l.b16 %v340
    %v650 = vunpack.c.l.b16 %v341
    %v651 = vunpack.c.h.b16 %v341
    %v652 = vunpack.c.l.b16 %v342
    %v653 = vunpack.c.l.b16 %v343
    %v654 = vunpack.c.h.b16 %v343
    %v655 = vunpack.c.l.b16 %v344
    %v656 = vunpack.c.l.b16 %v345
    %v657 = vunpack.c.h.b16 %v345
    %v658 = vunpack.c.l.b16 %v346
    %v659 = vunpack.c.l.b16 %v347
    %v660 = vunpack.c.h.b16 %v347
    %v661 = vunpack.c.l.b16 %v348
    %v662 = vunpack.c.l.b16 %v349
    %v663 = vunpack.c.h.b16 %v349
    %v664 = vunpack.c.l.b16 %v350
    %v665 = vunpack.c.l.b16 %v351
    %v666 = vunpack.c.h.b16 %v351
    %v667 = vunpack.c.l.b16 %v352
    %v668 = vunpack.c.l.b16 %v353
    %v669 = vunpack.c.h.b16 %v353
    %v670 = vunpack.c.l.b16 %v354
    %v671 = vunpack.c.l.b16 %v355
    %v672 = vunpack.c.h.b16 %v355
    %v673 = vunpack.c.l.b16 %v356
    %v674 = vunpack.c.l.b16 %v357
    %v675 = vunpack.c.h.b16 %v357
    %v676 = vunpack.c.l.b16 %v358
    %v677 = vunpack.c.l.b16 %v359
    %v678 = vunpack.c.h.b16 %v359
    %v679 = vunpack.c.l.b16 %v360
    %v680 = vunpack.c.l.b16 %v361
    %v681 = vunpack.c.h.b16 %v361
    %v682 = vunpack.c.l.b16 %v362
    %v683 = vunpack.c.l.b16 %v363
    %v684 = vunpack.c.h.b16 %v363
    %v685 = vunpack.c.l.b16 %v364
    %v686 = vunpack.c.l.b16 %v365
    %v687 = vunpack.c.h.b16 %v365
    %v688 = vunpack.c.l.b16 %v366
    %v689 = vunpack.c.l.b16 %v367
    %v690 = vunpack.c.h.b16 %v367
    %v691 = vunpack.c.l.b16 %v368
    %v692 = vunpack.c.l.b16 %v369
    %v693 = vunpack.c.h.b16 %v369
    %v694 = vunpack.c.l.b16 %v370
    %v695 = vunpack.c.l.b16 %v371
    %v696 = vunpack.c.h.b16 %v371
    %v697 = vunpack.c.l.b16 %v372
    %v698 = vunpack.c.l.b16 %v373
    %v699 = vunpack.c.h.b16 %v373
    %v700 = vunpack.c.l.b16 %v374
    %v701 = vunpack.c.l.b16 %v375
    %v702 = vunpack.c.h.b16 %v375
    %v703 = vunpack.c.l.b16 %v376
    %v704 = vunpack.c.l.b16 %v377
    %v705 = vunpack.c.h.b16 %v377
    %v706 = vunpack.c.l.b16 %v378
    %v707 = vunpack.c.l.b16 %v379
    %v708 = vunpack.c.h.b16 %v379
    %v709 = vunpack.c.l.b16 %v380
    %v710 = vunpack.c.l.b16 %v381
    %v711 = vunpack.c.h.b16 %v381
    %v712 = vunpack.c.l.b16 %v382
    %v713 = vunpack.c.l.b16 %v383
    %v714 = vunpack.c.h.b16 %v383
    %v715 = vunpack.c.l.b16 %v384
    %v716 = vunpack.c.l.b16 %v385
    %v717 = vunpack.c.h.b16 %v385
    %v718 = vunpack.c.l.b16 %v386
    %v719 = vunpack.c.l.b16 %v387
    %v720 = vunpack.c.h.b16 %v387
    %v721 = vunpack.c.l.b16 %v388
    %v722 = vunpack.c.l.b16 %v389
    %v723 = vunpack.c.h.b16 %v389
    %v724 = vunpack.c.l.b16 %v390
    %v725 = vunpack.c.l.b16 %v391
    %v726 = vunpack.c.h.b16 %v391
    %v727 = vunpack.c.l.b16 %v392
    %v728 = vunpack.c.l.b16 %v393
    %v729 = vunpack.c.h.b16 %v393
    %v730 = vunpack.c.l.b16 %v394
    %v731 = vunpack.c.l.b16 %v395
    %v732 = vunpack.c.h.b16 %v395
    %v733 = vunpack.c.l.b16 %v396
    %v734 = vpack.c.b16 %v545, %v542
    %v735 = vpack.c.b16 %v546, %v543
    %v736 = vpack.c.b16 %v547, %v544
    %v737 = vpack.c.b16 %v551, %v548
    %v738 = vpack.c.b16 %v552, %v549
    %v739 = vpack.c.b16 %v553, %v550
    %v740 = vpack.c.b16 %v557, %v554
    %v741 = vpack.c.b16 %v558, %v555
    %v742 = vpack.c.b16 %v559, %v556
    %v743 = vpack.c.b16 %v563, %v560
    %v744 = vpack.c.b16 %v564, %v561
    %v745 = vpack.c.b16 %v565, %v562
    %v746 = vpack.c.b16 %v569, %v566
    %v747 = vpack.c.b16 %v570, %v567
    %v748 = vpack.c.b16 %v571, %v568
    %v749 = vpack.c.b16 %v575, %v572
    %v750 = vpack.c.b16 %v576, %v573
    %v751 = vpack.c.b16 %v577, %v574
    %v752 = vpack.c.b16 %v581, %v578
    %v753 = vpack.c.b16 %v582, %v579
    %v754 = vpack.c.b16 %v583, %v580
    %v755 = vpack.c.b16 %v587, %v584
    %v756 = vpack.c.b16 %v588, %v585
    %v757 = vpack.c.b16 %v589, %v586
    %v758 = vpack.c.b16 %v593, %v590
    %v759 = vpack.c.b16 %v594, %v591
    %v760 = vpack.c.b16 %v595, %v592
    %v761 = vpack.c.b16 %v599, %v596
    %v762 = vpack.c.b16 %v600, %v597
    %v763 = vpack.c.b16 %v601, %v598
    %v764 = vpack.c.b16 %v605, %v602
    %v765 = vpack.c.b16 %v606, %v603
    %v766 = vpack.c.b16 %v607, %v604
    %v767 = vpack.c.b16 %v611, %v608
    %v768 = vpack.c.b16 %v612, %v609
    %v769 = vpack.c.b16 %v613, %v610
    %v770 = vpack.c.b16 %v617, %v614
    %v771 = vpack.c.b16 %v618, %v615
    %v772 = vpack.c.b16 %v619, %v616
    %v773 = vpack.c.b16 %v623, %v620
    %v774 = vpack.c.b16 %v624, %v621
    %v775 = vpack.c.b16 %v625, %v622
    %v776 = vpack.c.b16 %v629, %v626
    %v777 = vpack.c.b16 %v630, %v627
    %v778 = vpack.c.b16 %v631, %v628
    %v779 = vpack.c.b16 %v635, %v632
    %v780 = vpack.c.b16 %v636, %v633
    %v781 = vpack.c.b16 %v637, %v634
    %v782 = vpack.c.b16 %v641, %v638
    %v783 = vpack.c.b16 %v642, %v639
    %v784 = vpack.c.b16 %v643, %v640
    %v785 = vpack.c.b16 %v647, %v644
    %v786 = vpack.c.b16 %v648, %v645
    %v787 = vpack.c.b16 %v649, %v646
    %v788 = vpack.c.b16 %v653, %v650
    %v789 = vpack.c.b16 %v654, %v651
    %v790 = vpack.c.b16 %v655, %v652
    %v791 = vpack.c.b16 %v659, %v656
    %v792 = vpack.c.b16 %v660, %v657
    %v793 = vpack.c.b16 %v661, %v658
    %v794 = vpack.c.b16 %v665, %v662
    %v795 = vpack.c.b16 %v666, %v663
    %v796 = vpack.c.b16 %v667, %v664
    %v797 = vpack.c.b16 %v671, %v668
    %v798 = vpack.c.b16 %v672, %v669
    %v799 = vpack.c.b16 %v673, %v670
    %v800 = vpack.c.b16 %v677, %v674
    %v801 = vpack.c.b16 %v678, %v675
    %v802 = vpack.c.b16 %v679, %v676
    %v803 = vpack.c.b16 %v683, %v680
    %v804 = vpack.c.b16 %v684, %v681
    %v805 = vpack.c.b16 %v685, %v682
    %v806 = vpack.c.b16 %v689, %v686
    %v807 = vpack.c.b16 %v690, %v687
    %v808 = vpack.c.b16 %v691, %v688
    %v809 = vpack.c.b16 %v695, %v692
    %v810 = vpack.c.b16 %v696, %v693
    %v811 = vpack.c.b16 %v697, %v694
    %v812 = vpack.c.b16 %v701, %v698
    %v813 = vpack.c.b16 %v702, %v699
    %v814 = vpack.c.b16 %v703, %v700
    %v815 = vpack.c.b16 %v707, %v704
    %v816 = vpack.c.b16 %v708, %v705
    %v817 = vpack.c.b16 %v709, %v706
    %v818 = vpack.c.b16 %v713, %v710
    %v819 = vpack.c.b16 %v714, %v711
    %v820 = vpack.c.b16 %v715, %v712
    %v821 = vpack.c.b16 %v719, %v716
    %v822 = vpack.c.b16 %v720, %v717
    %v823 = vpack.c.b16 %v721, %v718
    %v824 = vpack.c.b16 %v725, %v722
    %v825 = vpack.c.b16 %v726, %v723
    %v826 = vpack.c.b16 %v727, %v724
    %v827 = vpack.c.b16 %v731, %v728
    %v828 = vpack.c.b16 %v732, %v729
    %v829 = vpack.c.b16 %v733, %v730
    %926 = vmatprep.subr.bf16.mxu0 %v735
    %927 = vmatpush1.bf16.msra.mxu0 %v734
    %928 = vmatprep.subr.bf16.mxu0 %v738
    %929 = vmatpush1.bf16.msra.mxu0 %v737
    %930 = vmatprep.subr.bf16.mxu0 %v741
    %931 = vmatpush1.bf16.msra.mxu0 %v740
    %932 = vmatprep.subr.bf16.mxu0 %v744
    %933 = vmatpush1.bf16.msra.mxu0 %v743
    %934 = vmatprep.subr.bf16.mxu0 %v747
    %935 = vmatpush1.bf16.msra.mxu0 %v746
    %936 = vmatprep.subr.bf16.mxu0 %v750
    %937 = vmatpush1.bf16.msra.mxu0 %v749
    %938 = vmatprep.subr.bf16.mxu0 %v753
    %939 = vmatpush1.bf16.msra.mxu0 %v752
    %940 = vmatprep.subr.bf16.mxu0 %v756
    %941 = vmatpush1.bf16.msra.mxu0 %v755
    %942 = vmatprep.subr.bf16.mxu0 %v759
    %943 = vmatpush1.bf16.msra.mxu0 %v758
    %944 = vmatprep.subr.bf16.mxu0 %v762
    %945 = vmatpush1.bf16.msra.mxu0 %v761
    %946 = vmatprep.subr.bf16.mxu0 %v765
    %947 = vmatpush1.bf16.msra.mxu0 %v764
    %948 = vmatprep.subr.bf16.mxu0 %v768
    %949 = vmatpush1.bf16.msra.mxu0 %v767
    %950 = vmatprep.subr.bf16.mxu0 %v771
    %951 = vmatpush1.bf16.msra.mxu0 %v770
    %952 = vmatprep.subr.bf16.mxu0 %v774
    %953 = vmatpush1.bf16.msra.mxu0 %v773
    %954 = vmatprep.subr.bf16.mxu0 %v777
    %955 = vmatpush1.bf16.msra.mxu0 %v776
    %956 = vmatprep.subr.bf16.mxu0 %v780
    %957 = vmatpush1.bf16.msra.mxu0 %v779
    %958 = vmatprep.mubr.bf16.mxu0 %v58
    %959 = vmatmul.mubr.bf16.gmra.mrb[0].mxu0 %v57
    %v960 = vpop.f32.mrb[0].mxu0
    %v961 = vadd.f32 %v402, %v960
    %v962 = vpop.f32.mrb[0].mxu0
    %v963 = vadd.f32 %v406, %v962
    %v964 = vpop.f32.mrb[0].mxu0
    %v965 = vadd.f32 %v402, %v964
    %v966 = vpop.f32.mrb[0].mxu0
    %v967 = vadd.f32 %v406, %v966
    %968 = vdwg.mxu0
    %969 = vmatprep.subr.bf16.mxu0 %v783
    %970 = vmatpush1.bf16.msra.mxu0 %v782
    %971 = vmatprep.subr.bf16.mxu0 %v786
    %972 = vmatpush1.bf16.msra.mxu0 %v785
    %973 = vmatprep.subr.bf16.mxu0 %v789
    %974 = vmatpush1.bf16.msra.mxu0 %v788
    %975 = vmatprep.subr.bf16.mxu0 %v792
    %976 = vmatpush1.bf16.msra.mxu0 %v791
    %977 = vmatprep.subr.bf16.mxu0 %v795
    %978 = vmatpush1.bf16.msra.mxu0 %v794
    %979 = vmatprep.subr.bf16.mxu0 %v798
    %980 = vmatpush1.bf16.msra.mxu0 %v797
    %981 = vmatprep.subr.bf16.mxu0 %v801
    %982 = vmatpush1.bf16.msra.mxu0 %v800
    %983 = vmatprep.subr.bf16.mxu0 %v804
    %984 = vmatpush1.bf16.msra.mxu0 %v803
    %985 = vmatprep.subr.bf16.mxu0 %v807
    %986 = vmatpush1.bf16.msra.mxu0 %v806
    %987 = vmatprep.subr.bf16.mxu0 %v810
    %988 = vmatpush1.bf16.msra.mxu0 %v809
    %989 = vmatprep.subr.bf16.mxu0 %v813
    %990 = vmatpush1.bf16.msra.mxu0 %v812
    %991 = vmatprep.subr.bf16.mxu0 %v816
    %992 = vmatpush1.bf16.msra.mxu0 %v815
    %993 = vmatprep.subr.bf16.mxu0 %v819
    %994 = vmatpush1.bf16.msra.mxu0 %v818
    %995 = vmatprep.subr.bf16.mxu0 %v822
    %996 = vmatpush1.bf16.msra.mxu0 %v821
    %997 = vmatprep.subr.bf16.mxu0 %v825
    %998 = vmatpush1.bf16.msra.mxu0 %v824
    %999 = vmatprep.subr.bf16.mxu0 %v828
    %1000 = vmatpush1.bf16.msra.mxu0 %v827
    %1001 = vmatprep.mubr.bf16.mxu0 %v60
    %1002 = vmatmul.mubr.bf16.gmra.mrb[0].mxu0 %v59
    %v1003 = vpop.f32.mrb[0].mxu0
    %v1004 = vadd.f32 %v961, %v1003
    %v1005 = vpop.f32.mrb[0].mxu0
    %v1006 = vadd.f32 %v963, %v1005
    %v1007 = vpop.f32.mrb[0].mxu0
    %v1008 = vadd.f32 %v965, %v1007
    %v1009 = vpop.f32.mrb[0].mxu0
    %v1010 = vadd.f32 %v967, %v1009
    %1011 = vdwg.mxu0
    %1012 = vmatprep.subr.bf16.mxu0 0
    %1013 = vmatpush1.bf16.msra.mxu0 %v736
    %1014 = vmatprep.subr.bf16.mxu0 0
    %1015 = vmatpush1.bf16.msra.mxu0 %v739
    %1016 = vmatprep.subr.bf16.mxu0 0
    %1017 = vmatpush1.bf16.msra.mxu0 %v742
    %1018 = vmatprep.subr.bf16.mxu0 0
    %1019 = vmatpush1.bf16.msra.mxu0 %v745
    %1020 = vmatprep.subr.bf16.mxu0 0
    %1021 = vmatpush1.bf16.msra.mxu0 %v748
    %1022 = vmatprep.subr.bf16.mxu0 0
    %1023 = vmatpush1.bf16.msra.mxu0 %v751
    %1024 = vmatprep.subr.bf16.mxu0 0
    %1025 = vmatpush1.bf16.msra.mxu0 %v754
    %1026 = vmatprep.subr.bf16.mxu0 0
    %1027 = vmatpush1.bf16.msra.mxu0 %v757
    %1028 = vmatprep.subr.bf16.mxu0 0
    %1029 = vmatpush1.bf16.msra.mxu0 %v760
    %1030 = vmatprep.subr.bf16.mxu0 0
    %1031 = vmatpush1.bf16.msra.mxu0 %v763
    %1032 = vmatprep.subr.bf16.mxu0 0
    %1033 = vmatpush1.bf16.msra.mxu0 %v766
    %1034 = vmatprep.subr.bf16.mxu0 0
    %1035 = vmatpush1.bf16.msra.mxu0 %v769
    %1036 = vmatprep.subr.bf16.mxu0 0
    %1037 = vmatpush1.bf16.msra.mxu0 %v772
    %1038 = vmatprep.subr.bf16.mxu0 0
    %1039 = vmatpush1.bf16.msra.mxu0 %v775
    %1040 = vmatprep.subr.bf16.mxu0 0
    %1041 = vmatpush1.bf16.msra.mxu0 %v778
    %1042 = vmatprep.subr.bf16.mxu0 0
    %1043 = vmatpush1.bf16.msra.mxu0 %v781
    %1044 = vmatprep.mubr.bf16.mxu0 %v58
    %1045 = vmatmul.mubr.bf16.gmra.mrb[0].mxu0 %v57
    %v1046 = vpop.f32.mrb[0].mxu0
    %v1047 = vadd.f32 %v410, %v1046
    %v1048 = vpop.f32.mrb[0].mxu0
    %v1049 = vpop.f32.mrb[0].mxu0
    %v1050 = vadd.f32 %v410, %v1049
    %v1051 = vpop.f32.mrb[0].mxu0
    %1052 = vdwg.mxu0
    %1053 = vmatprep.subr.bf16.mxu0 0
    %1054 = vmatpush1.bf16.msra.mxu0 %v784
    %1055 = vmatprep.subr.bf16.mxu0 0
    %1056 = vmatpush1.bf16.msra.mxu0 %v787
    %1057 = vmatprep.subr.bf16.mxu0 0
    %1058 = vmatpush1.bf16.msra.mxu0 %v790
    %1059 = vmatprep.subr.bf16.mxu0 0
    %1060 = vmatpush1.bf16.msra.mxu0 %v793
    %1061 = vmatprep.subr.bf16.mxu0 0
    %1062 = vmatpush1.bf16.msra.mxu0 %v796
    %1063 = vmatprep.subr.bf16.mxu0 0
    %1064 = vmatpush1.bf16.msra.mxu0 %v799
    %1065 = vmatprep.subr.bf16.mxu0 0
    %1066 = vmatpush1.bf16.msra.mxu0 %v802
    %1067 = vmatprep.subr.bf16.mxu0 0
    %1068 = vmatpush1.bf16.msra.mxu0 %v805
    %1069 = vmatprep.subr.bf16.mxu0 0
    %1070 = vmatpush1.bf16.msra.mxu0 %v808
    %1071 = vmatprep.subr.bf16.mxu0 0
    %1072 = vmatpush1.bf16.msra.mxu0 %v811
    %1073 = vmatprep.subr.bf16.mxu0 0
    %1074 = vmatpush1.bf16.msra.mxu0 %v814
    %1075 = vmatprep.subr.bf16.mxu0 0
    %1076 = vmatpush1.bf16.msra.mxu0 %v817
    %1077 = vmatprep.subr.bf16.mxu0 0
    %1078 = vmatpush1.bf16.msra.mxu0 %v820
    %1079 = vmatprep.subr.bf16.mxu0 0
    %1080 = vmatpush1.bf16.msra.mxu0 %v823
    %1081 = vmatprep.subr.bf16.mxu0 0
    %1082 = vmatpush1.bf16.msra.mxu0 %v826
    %1083 = vmatprep.subr.bf16.mxu0 0
    %1084 = vmatpush1.bf16.msra.mxu0 %v829
    %1085 = vmatprep.mubr.bf16.mxu0 %v60
    %1086 = vmatmul.mubr.bf16.gmra.mrb[0].mxu0 %v59
    %v1087 = vpop.f32.mrb[0].mxu0
    %v1088 = vadd.f32 %v1047, %v1087
    %v1089 = vpop.f32.mrb[0].mxu0
    %v1090 = vpop.f32.mrb[0].mxu0
    %v1091 = vadd.f32 %v1050, %v1090
    %v1092 = vpop.f32.mrb[0].mxu0
    %1093 = vdwg.mxu0
    %v1094 = vld [vmem:[%s6] sm:$0xf]
    %v1095 = vld [vmem:[%s6 + $0x4] sm:$0xf]
    %v1096 = vld [vmem:[%s6 + $0x8] sm:$0xf]
    %v1097 = vld [vmem:[%s6 + $0xc] sm:$0xf]
    %v1098 = vld [vmem:[%s6 + $0x10] sm:$0xf]
    %v1099 = vld [vmem:[%s6 + $0x14] sm:$0xf]
    %v1100 = vld [vmem:[%s6 + $0x18] sm:$0xf]
    %v1101 = vld [vmem:[%s6 + $0x1c] sm:$0xf]
    %v1102 = vld [vmem:[%s6 + $0x20] sm:$0xf]
    %v1103 = vld [vmem:[%s6 + $0x24] sm:$0xf]
    %v1104 = vld [vmem:[%s6 + $0x28] sm:$0xf]
    %v1105 = vld [vmem:[%s6 + $0x2c] sm:$0xf]
    %v1106 = vld [vmem:[%s6 + $0x30] sm:$0xf]
    %v1107 = vld [vmem:[%s6 + $0x34] sm:$0xf]
    %v1108 = vld [vmem:[%s6 + $0x38] sm:$0xf]
    %v1109 = vld [vmem:[%s6 + $0x3c] sm:$0xf]
    %v1110 = vld [vmem:[%s6 + $0x40] sm:$0xf]
    %v1111 = vld [vmem:[%s6 + $0x44] sm:$0xf]
    %v1112 = vld [vmem:[%s6 + $0x48] sm:$0xf]
    %v1113 = vld [vmem:[%s6 + $0x4c] sm:$0xf]
    %v1114 = vld [vmem:[%s6 + $0x50] sm:$0xf]
    %v1115 = vld [vmem:[%s6 + $0x54] sm:$0xf]
    %v1116 = vld [vmem:[%s6 + $0x58] sm:$0xf]
    %v1117 = vld [vmem:[%s6 + $0x5c] sm:$0xf]
    %v1118 = vld [vmem:[%s6 + $0x60] sm:$0xf]
    %v1119 = vld [vmem:[%s6 + $0x64] sm:$0xf]
    %v1120 = vld [vmem:[%s6 + $0x68] sm:$0xf]
    %v1121 = vld [vmem:[%s6 + $0x6c] sm:$0xf]
    %v1122 = vld [vmem:[%s6 + $0x70] sm:$0xf]
    %v1123 = vld [vmem:[%s6 + $0x74] sm:$0xf]
    %v1124 = vld [vmem:[%s6 + $0x78] sm:$0xf]
    %v1125 = vld [vmem:[%s6 + $0x7c] sm:$0xf]
    %v1126 = vld [vmem:[%s6 + $0x80] sm:$0xf]
    %v1127 = vld [vmem:[%s6 + $0x84] sm:$0xf]
    %v1128 = vld [vmem:[%s6 + $0x88] sm:$0xf]
    %v1129 = vld [vmem:[%s6 + $0x8c] sm:$0xf]
    %v1130 = vld [vmem:[%s6 + $0x90] sm:$0xf]
    %v1131 = vld [vmem:[%s6 + $0x94] sm:$0xf]
    %v1132 = vld [vmem:[%s6 + $0x98] sm:$0xf]
    %v1133 = vld [vmem:[%s6 + $0x9c] sm:$0xf]
    %v1134 = vld [vmem:[%s6 + $0xa0] sm:$0xf]
    %v1135 = vld [vmem:[%s6 + $0xa4] sm:$0xf]
    %v1136 = vld [vmem:[%s6 + $0xa8] sm:$0xf]
    %v1137 = vld [vmem:[%s6 + $0xac] sm:$0xf]
    %v1138 = vld [vmem:[%s6 + $0xb0] sm:$0xf]
    %v1139 = vld [vmem:[%s6 + $0xb4] sm:$0xf]
    %v1140 = vld [vmem:[%s6 + $0xb8] sm:$0xf]
    %v1141 = vld [vmem:[%s6 + $0xbc] sm:$0xf]
    %v1142 = vld [vmem:[%s6 + $0xc0] sm:$0xf]
    %v1143 = vld [vmem:[%s6 + $0xc4] sm:$0xf]
    %v1144 = vld [vmem:[%s6 + $0xc8] sm:$0xf]
    %v1145 = vld [vmem:[%s6 + $0xcc] sm:$0xf]
    %v1146 = vld [vmem:[%s6 + $0xd0] sm:$0xf]
    %v1147 = vld [vmem:[%s6 + $0xd4] sm:$0xf]
    %v1148 = vld [vmem:[%s6 + $0xd8] sm:$0xf]
    %v1149 = vld [vmem:[%s6 + $0xdc] sm:$0xf]
    %v1150 = vld [vmem:[%s6 + $0xe0] sm:$0xf]
    %v1151 = vld [vmem:[%s6 + $0xe4] sm:$0xf]
    %v1152 = vld [vmem:[%s6 + $0xe8] sm:$0xf]
    %v1153 = vld [vmem:[%s6 + $0xec] sm:$0xf]
    %v1154 = vld [vmem:[%s6 + $0xf0] sm:$0xf]
    %v1155 = vld [vmem:[%s6 + $0xf4] sm:$0xf]
    %v1156 = vld [vmem:[%s6 + $0xf8] sm:$0xf]
    %v1157 = vld [vmem:[%s6 + $0xfc] sm:$0xf]
    %v1158 = vld [vmem:[%s7] sm:$0x1]
    %v1160 = vlaneseq
    %v1161 = vshrl.u32 %v1160, 7
    %v1162 = vsub.s32 0, %v1161
    %v1163 = vrot.slane %v1158, %v1162
    %v1229 = vunpack.c.l.b16 %v1094
    %v1230 = vunpack.c.l.b16 %v1095
    %v1231 = vunpack.c.l.b16 %v1096
    %v1232 = vunpack.c.l.b16 %v1097
    %v1233 = vunpack.c.l.b16 %v1098
    %v1234 = vunpack.c.l.b16 %v1099
    %v1235 = vunpack.c.l.b16 %v1100
    %v1236 = vunpack.c.l.b16 %v1101
    %v1237 = vunpack.c.l.b16 %v1102
    %v1238 = vunpack.c.l.b16 %v1103
    %v1239 = vunpack.c.l.b16 %v1104
    %v1240 = vunpack.c.l.b16 %v1105
    %v1241 = vunpack.c.l.b16 %v1106
    %v1242 = vunpack.c.l.b16 %v1107
    %v1243 = vunpack.c.l.b16 %v1108
    %v1244 = vunpack.c.l.b16 %v1109
    %v1245 = vunpack.c.l.b16 %v1110
    %v1246 = vunpack.c.l.b16 %v1111
    %v1247 = vunpack.c.l.b16 %v1112
    %v1248 = vunpack.c.l.b16 %v1113
    %v1249 = vunpack.c.l.b16 %v1114
    %v1250 = vunpack.c.l.b16 %v1115
    %v1251 = vunpack.c.l.b16 %v1116
    %v1252 = vunpack.c.l.b16 %v1117
    %v1253 = vunpack.c.l.b16 %v1118
    %v1254 = vunpack.c.l.b16 %v1119
    %v1255 = vunpack.c.l.b16 %v1120
    %v1256 = vunpack.c.l.b16 %v1121
    %v1257 = vunpack.c.l.b16 %v1122
    %v1258 = vunpack.c.l.b16 %v1123
    %v1259 = vunpack.c.l.b16 %v1124
    %v1260 = vunpack.c.l.b16 %v1125
    %v1261 = vunpack.c.l.b16 %v1126
    %v1262 = vunpack.c.l.b16 %v1127
    %v1263 = vunpack.c.l.b16 %v1128
    %v1264 = vunpack.c.l.b16 %v1129
    %v1265 = vunpack.c.l.b16 %v1130
    %v1266 = vunpack.c.l.b16 %v1131
    %v1267 = vunpack.c.l.b16 %v1132
    %v1268 = vunpack.c.l.b16 %v1133
    %v1269 = vunpack.c.l.b16 %v1134
    %v1270 = vunpack.c.l.b16 %v1135
    %v1271 = vunpack.c.l.b16 %v1136
    %v1272 = vunpack.c.l.b16 %v1137
    %v1273 = vunpack.c.l.b16 %v1138
    %v1274 = vunpack.c.l.b16 %v1139
    %v1275 = vunpack.c.l.b16 %v1140
    %v1276 = vunpack.c.l.b16 %v1141
    %v1277 = vunpack.c.l.b16 %v1142
    %v1278 = vunpack.c.l.b16 %v1143
    %v1279 = vunpack.c.l.b16 %v1144
    %v1280 = vunpack.c.l.b16 %v1145
    %v1281 = vunpack.c.l.b16 %v1146
    %v1282 = vunpack.c.l.b16 %v1147
    %v1283 = vunpack.c.l.b16 %v1148
    %v1284 = vunpack.c.l.b16 %v1149
    %v1285 = vunpack.c.l.b16 %v1150
    %v1286 = vunpack.c.l.b16 %v1151
    %v1287 = vunpack.c.l.b16 %v1152
    %v1288 = vunpack.c.l.b16 %v1153
    %v1289 = vunpack.c.l.b16 %v1154
    %v1290 = vunpack.c.l.b16 %v1155
    %v1291 = vunpack.c.l.b16 %v1156
    %v1292 = vunpack.c.l.b16 %v1157
    %v1293 = vpack.c.b16 %v1230, %v1229
    %v1294 = vpack.c.b16 %v1232, %v1231
    %v1295 = vpack.c.b16 %v1234, %v1233
    %v1296 = vpack.c.b16 %v1236, %v1235
    %v1297 = vpack.c.b16 %v1238, %v1237
    %v1298 = vpack.c.b16 %v1240, %v1239
    %v1299 = vpack.c.b16 %v1242, %v1241
    %v1300 = vpack.c.b16 %v1244, %v1243
    %v1301 = vpack.c.b16 %v1246, %v1245
    %v1302 = vpack.c.b16 %v1248, %v1247
    %v1303 = vpack.c.b16 %v1250, %v1249
    %v1304 = vpack.c.b16 %v1252, %v1251
    %v1305 = vpack.c.b16 %v1254, %v1253
    %v1306 = vpack.c.b16 %v1256, %v1255
    %v1307 = vpack.c.b16 %v1258, %v1257
    %v1308 = vpack.c.b16 %v1260, %v1259
    %v1309 = vpack.c.b16 %v1262, %v1261
    %v1310 = vpack.c.b16 %v1264, %v1263
    %v1311 = vpack.c.b16 %v1266, %v1265
    %v1312 = vpack.c.b16 %v1268, %v1267
    %v1313 = vpack.c.b16 %v1270, %v1269
    %v1314 = vpack.c.b16 %v1272, %v1271
    %v1315 = vpack.c.b16 %v1274, %v1273
    %v1316 = vpack.c.b16 %v1276, %v1275
    %v1317 = vpack.c.b16 %v1278, %v1277
    %v1318 = vpack.c.b16 %v1280, %v1279
    %v1319 = vpack.c.b16 %v1282, %v1281
    %v1320 = vpack.c.b16 %v1284, %v1283
    %v1321 = vpack.c.b16 %v1286, %v1285
    %v1322 = vpack.c.b16 %v1288, %v1287
    %v1323 = vpack.c.b16 %v1290, %v1289
    %v1324 = vpack.c.b16 %v1292, %v1291
    %1357 = vmatprep.subr.bf16.mxu0 0
    %1358 = vmatpush1.bf16.msra.mxu0 %v1293
    %1359 = vmatprep.subr.bf16.mxu0 0
    %1360 = vmatpush1.bf16.msra.mxu0 %v1294
    %1361 = vmatprep.subr.bf16.mxu0 0
    %1362 = vmatpush1.bf16.msra.mxu0 %v1295
    %1363 = vmatprep.subr.bf16.mxu0 0
    %1364 = vmatpush1.bf16.msra.mxu0 %v1296
    %1365 = vmatprep.subr.bf16.mxu0 0
    %1366 = vmatpush1.bf16.msra.mxu0 %v1297
    %1367 = vmatprep.subr.bf16.mxu0 0
    %1368 = vmatpush1.bf16.msra.mxu0 %v1298
    %1369 = vmatprep.subr.bf16.mxu0 0
    %1370 = vmatpush1.bf16.msra.mxu0 %v1299
    %1371 = vmatprep.subr.bf16.mxu0 0
    %1372 = vmatpush1.bf16.msra.mxu0 %v1300
    %1373 = vmatprep.subr.bf16.mxu0 0
    %1374 = vmatpush1.bf16.msra.mxu0 %v1301
    %1375 = vmatprep.subr.bf16.mxu0 0
    %1376 = vmatpush1.bf16.msra.mxu0 %v1302
    %1377 = vmatprep.subr.bf16.mxu0 0
    %1378 = vmatpush1.bf16.msra.mxu0 %v1303
    %1379 = vmatprep.subr.bf16.mxu0 0
    %1380 = vmatpush1.bf16.msra.mxu0 %v1304
    %1381 = vmatprep.subr.bf16.mxu0 0
    %1382 = vmatpush1.bf16.msra.mxu0 %v1305
    %1383 = vmatprep.subr.bf16.mxu0 0
    %1384 = vmatpush1.bf16.msra.mxu0 %v1306
    %1385 = vmatprep.subr.bf16.mxu0 0
    %1386 = vmatpush1.bf16.msra.mxu0 %v1307
    %1387 = vmatprep.subr.bf16.mxu0 0
    %1388 = vmatpush1.bf16.msra.mxu0 %v1308
    %1389 = vmatprep.mubr.bf16.mxu0 %v58
    %1390 = vmatmul.mubr.bf16.gmra.mrb[0].mxu0 %v57
    %v1391 = vpop.f32.mrb[0].mxu0
    %v1392 = vadd.f32 %v1163, %v1391
    %v1393 = vpop.f32.mrb[0].mxu0
    %v1394 = vpop.f32.mrb[0].mxu0
    %v1395 = vadd.f32 %v1163, %v1394
    %v1396 = vpop.f32.mrb[0].mxu0
    %1397 = vdwg.mxu0
    %1398 = vmatprep.subr.bf16.mxu0 0
    %1399 = vmatpush1.bf16.msra.mxu0 %v1309
    %1400 = vmatprep.subr.bf16.mxu0 0
    %1401 = vmatpush1.bf16.msra.mxu0 %v1310
    %1402 = vmatprep.subr.bf16.mxu0 0
    %1403 = vmatpush1.bf16.msra.mxu0 %v1311
    %1404 = vmatprep.subr.bf16.mxu0 0
    %1405 = vmatpush1.bf16.msra.mxu0 %v1312
    %1406 = vmatprep.subr.bf16.mxu0 0
    %1407 = vmatpush1.bf16.msra.mxu0 %v1313
    %1408 = vmatprep.subr.bf16.mxu0 0
    %1409 = vmatpush1.bf16.msra.mxu0 %v1314
    %1410 = vmatprep.subr.bf16.mxu0 0
    %1411 = vmatpush1.bf16.msra.mxu0 %v1315
    %1412 = vmatprep.subr.bf16.mxu0 0
    %1413 = vmatpush1.bf16.msra.mxu0 %v1316
    %1414 = vmatprep.subr.bf16.mxu0 0
    %1415 = vmatpush1.bf16.msra.mxu0 %v1317
    %1416 = vmatprep.subr.bf16.mxu0 0
    %1417 = vmatpush1.bf16.msra.mxu0 %v1318
    %1418 = vmatprep.subr.bf16.mxu0 0
    %1419 = vmatpush1.bf16.msra.mxu0 %v1319
    %1420 = vmatprep.subr.bf16.mxu0 0
    %1421 = vmatpush1.bf16.msra.mxu0 %v1320
    %1422 = vmatprep.subr.bf16.mxu0 0
    %1423 = vmatpush1.bf16.msra.mxu0 %v1321
    %1424 = vmatprep.subr.bf16.mxu0 0
    %1425 = vmatpush1.bf16.msra.mxu0 %v1322
    %1426 = vmatprep.subr.bf16.mxu0 0
    %1427 = vmatpush1.bf16.msra.mxu0 %v1323
    %1428 = vmatprep.subr.bf16.mxu0 0
    %1429 = vmatpush1.bf16.msra.mxu0 %v1324
    %1430 = vmatprep.mubr.bf16.mxu0 %v60
    %1431 = vmatmul.mubr.bf16.gmra.mrb[0].mxu0 %v59
    %v1432 = vpop.f32.mrb[0].mxu0
    %v1433 = vadd.f32 %v1392, %v1432
    %v1434 = vpop.f32.mrb[0].mxu0
    %v1435 = vpop.f32.mrb[0].mxu0
    %v1436 = vadd.f32 %v1395, %v1435
    %v1437 = vpop.f32.mrb[0].mxu0
    %1438 = vdwg.mxu0
    %v1439 = vpack.c.bf16 %v206, %v202
    %v1440 = vpack.c.bf16 %v208, %v204
    %v1441 = vpack.c.bf16 %v258, %v255
    %v1442 = vpack.c.bf16 %v1004, %v1004
    %v1443 = vpack.c.bf16 %v1006, %v1006
    %v1444 = vpack.c.bf16 %v1088, %v1088
    %v1445 = vpack.c.bf16 %v1433, %v1433
    %1446 = vmatprep.subr.bf16.mxu0 %v1443
    %1447 = vmatpush1.bf16.xpose.msra.mxu0 %v1442
    %1448 = vmatprep.subr.bf16.mxu0 0
    %1449 = vmatpush1.bf16.xpose.msra.mxu0 0
    %1450 = vmatprep.subr.bf16.mxu0 0
    %1451 = vmatpush1.bf16.xpose.msra.mxu0 0
    %1452 = vmatprep.subr.bf16.mxu0 0
    %1453 = vmatpush1.bf16.xpose.msra.mxu0 0
    %1454 = vmatprep.subr.bf16.mxu0 0
    %1455 = vmatpush1.bf16.xpose.msra.mxu0 0
    %1456 = vmatprep.subr.bf16.mxu0 0
    %1457 = vmatpush1.bf16.xpose.msra.mxu0 0
    %1458 = vmatprep.subr.bf16.mxu0 0
    %1459 = vmatpush1.bf16.xpose.msra.mxu0 0
    %1460 = vmatprep.subr.bf16.mxu0 0
    %1461 = vmatpush1.bf16.xpose.msra.mxu0 0
    %1462 = vmatprep.subr.bf16.mxu0 0
    %1463 = vmatpush1.bf16.xpose.msra.mxu0 0
    %1464 = vmatprep.subr.bf16.mxu0 0
    %1465 = vmatpush1.bf16.xpose.msra.mxu0 0
    %1466 = vmatprep.subr.bf16.mxu0 0
    %1467 = vmatpush1.bf16.xpose.msra.mxu0 0
    %1468 = vmatprep.subr.bf16.mxu0 0
    %1469 = vmatpush1.bf16.xpose.msra.mxu0 0
    %1470 = vmatprep.subr.bf16.mxu0 0
    %1471 = vmatpush1.bf16.xpose.msra.mxu0 0
    %1472 = vmatprep.subr.bf16.mxu0 0
    %1473 = vmatpush1.bf16.xpose.msra.mxu0 0
    %1474 = vmatprep.subr.bf16.mxu0 0
    %1475 = vmatpush1.bf16.xpose.msra.mxu0 0
    %1476 = vmatprep.subr.bf16.mxu0 0
    %1477 = vmatpush1.bf16.xpose.msra.mxu0 0
    %1478 = vmatprep.mubr.bf16.mxu0 %v1440
    %1479 = vmatmul.mubr.bf16.gmra.mrb[0].mxu0 %v1439
    %v1480 = vpop.f32.mrb[0].mxu0
    %v1481 = vadd.f32 0.0, %v1480
    %v1482 = vpop.f32.mrb[0].mxu0
    %v1483 = vpop.f32.mrb[0].mxu0
    %v1484 = vadd.f32 0.0, %v1483
    %v1485 = vpop.f32.mrb[0].mxu0
    %1486 = vdwg.mxu0
    %1487 = vmatprep.subr.bf16.mxu0 0
    %1488 = vmatpush1.bf16.xpose.msra.mxu0 %v1444
    %1489 = vmatprep.subr.bf16.mxu0 0
    %1490 = vmatpush1.bf16.xpose.msra.mxu0 0
    %1491 = vmatprep.subr.bf16.mxu0 0
    %1492 = vmatpush1.bf16.xpose.msra.mxu0 0
    %1493 = vmatprep.subr.bf16.mxu0 0
    %1494 = vmatpush1.bf16.xpose.msra.mxu0 0
    %1495 = vmatprep.subr.bf16.mxu0 0
    %1496 = vmatpush1.bf16.xpose.msra.mxu0 0
    %1497 = vmatprep.subr.bf16.mxu0 0
    %1498 = vmatpush1.bf16.xpose.msra.mxu0 0
    %1499 = vmatprep.subr.bf16.mxu0 0
    %1500 = vmatpush1.bf16.xpose.msra.mxu0 0
    %1501 = vmatprep.subr.bf16.mxu0 0
    %1502 = vmatpush1.bf16.xpose.msra.mxu0 0
    %1503 = vmatprep.subr.bf16.mxu0 0
    %1504 = vmatpush1.bf16.xpose.msra.mxu0 0
    %1505 = vmatprep.subr.bf16.mxu0 0
    %1506 = vmatpush1.bf16.xpose.msra.mxu0 0
    %1507 = vmatprep.subr.bf16.mxu0 0
    %1508 = vmatpush1.bf16.xpose.msra.mxu0 0
    %1509 = vmatprep.subr.bf16.mxu0 0
    %1510 = vmatpush1.bf16.xpose.msra.mxu0 0
    %1511 = vmatprep.subr.bf16.mxu0 0
    %1512 = vmatpush1.bf16.xpose.msra.mxu0 0
    %1513 = vmatprep.subr.bf16.mxu0 0
    %1514 = vmatpush1.bf16.xpose.msra.mxu0 0
    %1515 = vmatprep.subr.bf16.mxu0 0
    %1516 = vmatpush1.bf16.xpose.msra.mxu0 0
    %1517 = vmatprep.subr.bf16.mxu0 0
    %1518 = vmatpush1.bf16.xpose.msra.mxu0 0
    %1519 = vmatprep.mubr.bf16.mxu0 0
    %1520 = vmatmul.mubr.bf16.gmra.mrb[0].mxu0 %v1441
    %v1521 = vpop.f32.mrb[0].mxu0
    %v1522 = vadd.f32 %v1481, %v1521
    %v1523 = vpop.f32.mrb[0].mxu0
    %v1524 = vpop.f32.mrb[0].mxu0
    %v1525 = vadd.f32 %v1484, %v1524
    %v1526 = vpop.f32.mrb[0].mxu0
    %1527 = vdwg.mxu0
    %vm1528 = vcmask 64512
    %v1529 = vsel %vm1528, %v1522, -inf
    %v1530 = vsel %vm1528, %v1525, -inf
    %v1531 = vmax.f32 %v1529, %v1530
    %v1532 = vrot.slane %v1531, 4
    %v1533 = vmax.f32 %v1531, %v1532
    %v1534 = vrot.slane %v1533, 2
    %v1535 = vmax.f32 %v1533, %v1534
    %v1536 = vrot.slane %v1535, 1
    %v1537 = vmax.f32 %v1535, %v1536
    %v1538 = vsub.f32 %v1522, %v1537
    %v1539 = vsub.f32 %v1525, %v1537
    %v1540 = vmul.f32 %v1538, 1.442695
    %v1541 = vpow.pop %v1540
    %v1542 = vmul.f32 %v1539, 1.442695
    %v1543 = vpow.pop %v1542
    %v1544 = vsel %vm1528, %v1541, 0.0
    %v1545 = vsel %vm1528, %v1543, 0.0
    %v1546 = vadd.f32 %v1544, %v1545
    %v1547 = vrot.slane %v1546, 4
    %v1548 = vadd.f32 %v1546, %v1547
    %v1549 = vrot.slane %v1548, 2
    %v1550 = vadd.f32 %v1548, %v1549
    %v1551 = vrot.slane %v1550, 1
    %v1552 = vadd.f32 %v1550, %v1551
    %v1553 = vrcp.pop %v1552
    %v1554 = vmul.f32 %v1541, %v1553
    %v1555 = vmul.f32 %v1543, %v1553
    %v1556 = vpack.c.bf16 %v1555, %v1554
    %v1558 = vsel %vm1528, %v1556, 0
    %vm1560 = vcmask 1043456
    %v1562 = vsel %vm1560, %v1445, 0
    %1564 = vmatprep.subr.bf16.mxu0 0
    %1565 = vmatpush1.bf16.msra.mxu0 %v1562
    %1566 = vmatprep.subr.bf16.mxu0 0
    %1567 = vmatpush1.bf16.msra.mxu0 0
    %1568 = vmatprep.subr.bf16.mxu0 0
    %1569 = vmatpush1.bf16.msra.mxu0 0
    %1570 = vmatprep.subr.bf16.mxu0 0
    %1571 = vmatpush1.bf16.msra.mxu0 0
    %1572 = vmatprep.subr.bf16.mxu0 0
    %1573 = vmatpush1.bf16.msra.mxu0 0
    %1574 = vmatprep.subr.bf16.mxu0 0
    %1575 = vmatpush1.bf16.msra.mxu0 0
    %1576 = vmatprep.subr.bf16.mxu0 0
    %1577 = vmatpush1.bf16.msra.mxu0 0
    %1578 = vmatprep.subr.bf16.mxu0 0
    %1579 = vmatpush1.bf16.msra.mxu0 0
    %1580 = vmatprep.subr.bf16.mxu0 0
    %1581 = vmatpush1.bf16.msra.mxu0 0
    %1582 = vmatprep.subr.bf16.mxu0 0
    %1583 = vmatpush1.bf16.msra.mxu0 0
    %1584 = vmatprep.subr.bf16.mxu0 0
    %1585 = vmatpush1.bf16.msra.mxu0 0
    %1586 = vmatprep.subr.bf16.mxu0 0
    %1587 = vmatpush1.bf16.msra.mxu0 0
    %1588 = vmatprep.subr.bf16.mxu0 0
    %1589 = vmatpush1.bf16.msra.mxu0 0
    %1590 = vmatprep.subr.bf16.mxu0 0
    %1591 = vmatpush1.bf16.msra.mxu0 0
    %1592 = vmatprep.subr.bf16.mxu0 0
    %1593 = vmatpush1.bf16.msra.mxu0 0
    %1594 = vmatprep.subr.bf16.mxu0 0
    %1595 = vmatpush1.bf16.msra.mxu0 0
    %1596 = vmatprep.mubr.bf16.mxu0 0
    %1597 = vmatmul.mubr.bf16.gmra.mrb[0].mxu0 %v1558
    %v1598 = vpop.f32.mrb[0].mxu0
    %v1599 = vadd.f32 0.0, %v1598
    %v1600 = vpop.f32.mrb[0].mxu0
    %v1601 = vpop.f32.mrb[0].mxu0
    %v1602 = vadd.f32 0.0, %v1601
    %v1603 = vpop.f32.mrb[0].mxu0
    %1604 = vdwg.mxu0
    %v1605 = vadd.f32 %v45, %v1599
    %v1606 = vadd.f32 %v46, %v1602
    %1607 = vst.msk [vmem:[#allocation5] sm:$0xff] %vm160, %v1605
    %1608 = vst.msk [vmem:[#allocation5 + $0x8] sm:$0xff] %vm160, %v1606
    %v1609 = vpack.c.bf16 %v216, %v212
    %v1610 = vpack.c.bf16 %v218, %v214
    %v1611 = vpack.c.bf16 %v266, %v263
    %v1612 = vpack.c.bf16 %v1008, %v1008
    %v1613 = vpack.c.bf16 %v1010, %v1010
    %v1614 = vpack.c.bf16 %v1091, %v1091
    %v1615 = vpack.c.bf16 %v1436, %v1436
    %1616 = vmatprep.subr.bf16.mxu0 %v1613
    %1617 = vmatpush1.bf16.xpose.msra.mxu0 %v1612
    %1618 = vmatprep.subr.bf16.mxu0 0
    %1619 = vmatpush1.bf16.xpose.msra.mxu0 0
    %1620 = vmatprep.subr.bf16.mxu0 0
    %1621 = vmatpush1.bf16.xpose.msra.mxu0 0
    %1622 = vmatprep.subr.bf16.mxu0 0
    %1623 = vmatpush1.bf16.xpose.msra.mxu0 0
    %1624 = vmatprep.subr.bf16.mxu0 0
    %1625 = vmatpush1.bf16.xpose.msra.mxu0 0
    %1626 = vmatprep.subr.bf16.mxu0 0
    %1627 = vmatpush1.bf16.xpose.msra.mxu0 0
    %1628 = vmatprep.subr.bf16.mxu0 0
    %1629 = vmatpush1.bf16.xpose.msra.mxu0 0
    %1630 = vmatprep.subr.bf16.mxu0 0
    %1631 = vmatpush1.bf16.xpose.msra.mxu0 0
    %1632 = vmatprep.subr.bf16.mxu0 0
    %1633 = vmatpush1.bf16.xpose.msra.mxu0 0
    %1634 = vmatprep.subr.bf16.mxu0 0
    %1635 = vmatpush1.bf16.xpose.msra.mxu0 0
    %1636 = vmatprep.subr.bf16.mxu0 0
    %1637 = vmatpush1.bf16.xpose.msra.mxu0 0
    %1638 = vmatprep.subr.bf16.mxu0 0
    %1639 = vmatpush1.bf16.xpose.msra.mxu0 0
    %1640 = vmatprep.subr.bf16.mxu0 0
    %1641 = vmatpush1.bf16.xpose.msra.mxu0 0
    %1642 = vmatprep.subr.bf16.mxu0 0
    %1643 = vmatpush1.bf16.xpose.msra.mxu0 0
    %1644 = vmatprep.subr.bf16.mxu0 0
    %1645 = vmatpush1.bf16.xpose.msra.mxu0 0
    %1646 = vmatprep.subr.bf16.mxu0 0
    %1647 = vmatpush1.bf16.xpose.msra.mxu0 0
    %1648 = vmatprep.mubr.bf16.mxu0 %v1610
    %1649 = vmatmul.mubr.bf16.gmra.mrb[0].mxu0 %v1609
    %v1650 = vpop.f32.mrb[0].mxu0
    %v1651 = vadd.f32 0.0, %v1650
    %v1652 = vpop.f32.mrb[0].mxu0
    %v1653 = vpop.f32.mrb[0].mxu0
    %v1654 = vadd.f32 0.0, %v1653
    %v1655 = vpop.f32.mrb[0].mxu0
    %1656 = vdwg.mxu0
    %1657 = vmatprep.subr.bf16.mxu0 0
    %1658 = vmatpush1.bf16.xpose.msra.mxu0 %v1614
    %1659 = vmatprep.subr.bf16.mxu0 0
    %1660 = vmatpush1.bf16.xpose.msra.mxu0 0
    %1661 = vmatprep.subr.bf16.mxu0 0
    %1662 = vmatpush1.bf16.xpose.msra.mxu0 0
    %1663 = vmatprep.subr.bf16.mxu0 0
    %1664 = vmatpush1.bf16.xpose.msra.mxu0 0
    %1665 = vmatprep.subr.bf16.mxu0 0
    %1666 = vmatpush1.bf16.xpose.msra.mxu0 0
    %1667 = vmatprep.subr.bf16.mxu0 0
    %1668 = vmatpush1.bf16.xpose.msra.mxu0 0
    %1669 = vmatprep.subr.bf16.mxu0 0
    %1670 = vmatpush1.bf16.xpose.msra.mxu0 0
    %1671 = vmatprep.subr.bf16.mxu0 0
    %1672 = vmatpush1.bf16.xpose.msra.mxu0 0
    %1673 = vmatprep.subr.bf16.mxu0 0
    %1674 = vmatpush1.bf16.xpose.msra.mxu0 0
    %1675 = vmatprep.subr.bf16.mxu0 0
    %1676 = vmatpush1.bf16.xpose.msra.mxu0 0
    %1677 = vmatprep.subr.bf16.mxu0 0
    %1678 = vmatpush1.bf16.xpose.msra.mxu0 0
    %1679 = vmatprep.subr.bf16.mxu0 0
    %1680 = vmatpush1.bf16.xpose.msra.mxu0 0
    %1681 = vmatprep.subr.bf16.mxu0 0
    %1682 = vmatpush1.bf16.xpose.msra.mxu0 0
    %1683 = vmatprep.subr.bf16.mxu0 0
    %1684 = vmatpush1.bf16.xpose.msra.mxu0 0
    %1685 = vmatprep.subr.bf16.mxu0 0
    %1686 = vmatpush1.bf16.xpose.msra.mxu0 0
    %1687 = vmatprep.subr.bf16.mxu0 0
    %1688 = vmatpush1.bf16.xpose.msra.mxu0 0
    %1689 = vmatprep.mubr.bf16.mxu0 0
    %1690 = vmatmul.mubr.bf16.gmra.mrb[0].mxu0 %v1611
    %v1691 = vpop.f32.mrb[0].mxu0
    %v1692 = vadd.f32 %v1651, %v1691
    %v1693 = vpop.f32.mrb[0].mxu0
    %v1694 = vpop.f32.mrb[0].mxu0
    %v1695 = vadd.f32 %v1654, %v1694
    %v1696 = vpop.f32.mrb[0].mxu0
    %1697 = vdwg.mxu0
    %v1698 = vsel %vm1528, %v1692, -inf
    %v1699 = vsel %vm1528, %v1695, -inf
    %v1700 = vmax.f32 %v1698, %v1699
    %v1701 = vrot.slane %v1700, 4
    %v1702 = vmax.f32 %v1700, %v1701
    %v1703 = vrot.slane %v1702, 2
    %v1704 = vmax.f32 %v1702, %v1703
    %v1705 = vrot.slane %v1704, 1
    %v1706 = vmax.f32 %v1704, %v1705
    %v1707 = vsub.f32 %v1692, %v1706
    %v1708 = vsub.f32 %v1695, %v1706
    %v1709 = vmul.f32 %v1707, 1.442695
    %v1710 = vpow.pop %v1709
    %v1711 = vmul.f32 %v1708, 1.442695
    %v1712 = vpow.pop %v1711
    %v1713 = vsel %vm1528, %v1710, 0.0
    %v1714 = vsel %vm1528, %v1712, 0.0
    %v1715 = vadd.f32 %v1713, %v1714
    %v1716 = vrot.slane %v1715, 4
    %v1717 = vadd.f32 %v1715, %v1716
    %v1718 = vrot.slane %v1717, 2
    %v1719 = vadd.f32 %v1717, %v1718
    %v1720 = vrot.slane %v1719, 1
    %v1721 = vadd.f32 %v1719, %v1720
    %v1722 = vrcp.pop %v1721
    %v1723 = vmul.f32 %v1710, %v1722
    %v1724 = vmul.f32 %v1712, %v1722
    %v1725 = vpack.c.bf16 %v1724, %v1723
    %v1727 = vsel %vm1528, %v1725, 0
    %v1730 = vsel %vm1560, %v1615, 0
    %1732 = vmatprep.subr.bf16.mxu0 0
    %1733 = vmatpush1.bf16.msra.mxu0 %v1730
    %1734 = vmatprep.subr.bf16.mxu0 0
    %1735 = vmatpush1.bf16.msra.mxu0 0
    %1736 = vmatprep.subr.bf16.mxu0 0
    %1737 = vmatpush1.bf16.msra.mxu0 0
    %1738 = vmatprep.subr.bf16.mxu0 0
    %1739 = vmatpush1.bf16.msra.mxu0 0
    %1740 = vmatprep.subr.bf16.mxu0 0
    %1741 = vmatpush1.bf16.msra.mxu0 0
    %1742 = vmatprep.subr.bf16.mxu0 0
    %1743 = vmatpush1.bf16.msra.mxu0 0
    %1744 = vmatprep.subr.bf16.mxu0 0
    %1745 = vmatpush1.bf16.msra.mxu0 0
    %1746 = vmatprep.subr.bf16.mxu0 0
    %1747 = vmatpush1.bf16.msra.mxu0 0
    %1748 = vmatprep.subr.bf16.mxu0 0
    %1749 = vmatpush1.bf16.msra.mxu0 0
    %1750 = vmatprep.subr.bf16.mxu0 0
    %1751 = vmatpush1.bf16.msra.mxu0 0
    %1752 = vmatprep.subr.bf16.mxu0 0
    %1753 = vmatpush1.bf16.msra.mxu0 0
    %1754 = vmatprep.subr.bf16.mxu0 0
    %1755 = vmatpush1.bf16.msra.mxu0 0
    %1756 = vmatprep.subr.bf16.mxu0 0
    %1757 = vmatpush1.bf16.msra.mxu0 0
    %1758 = vmatprep.subr.bf16.mxu0 0
    %1759 = vmatpush1.bf16.msra.mxu0 0
    %1760 = vmatprep.subr.bf16.mxu0 0
    %1761 = vmatpush1.bf16.msra.mxu0 0
    %1762 = vmatprep.subr.bf16.mxu0 0
    %1763 = vmatpush1.bf16.msra.mxu0 0
    %1764 = vmatprep.mubr.bf16.mxu0 0
    %1765 = vmatmul.mubr.bf16.gmra.mrb[0].mxu0 %v1727
    %v1766 = vpop.f32.mrb[0].mxu0
    %v1767 = vadd.f32 0.0, %v1766
    %v1768 = vpop.f32.mrb[0].mxu0
    %v1769 = vpop.f32.mrb[0].mxu0
    %v1770 = vadd.f32 0.0, %v1769
    %v1771 = vpop.f32.mrb[0].mxu0
    %1772 = vdwg.mxu0
    %v1773 = vadd.f32 %v47, %v1767
    %v1774 = vadd.f32 %v48, %v1770
    %1775 = vst.msk [vmem:[#allocation5 + $0x10] sm:$0xff] %vm160, %v1773
    %1776 = vst.msk [vmem:[#allocation5 + $0x18] sm:$0xff] %vm160, %v1774
    // Predicated region
    $region38: #{token_proj_forward.1} parent=1 // pred_check
      _
    $region39: #{token_proj_forward.1} parent=1 // pred_check_branch
      %1778 = sbr.rel (0) target = $region41
    $region40: #{token_proj_forward.1} parent=1 // pred_region
      %s1780 = ssub.s32 512, 512
      %1781 = vsyncadd [#allocation4], %s1780
      %s1782 = sshll.u32 [#allocation5], 4
      %s1783 = int_to_ptr.vmem [resolvable:$true] %s1782
      %1788 = dma.vmem_to_hbm [thread:$0]  %s1783, 512, %s8, [#allocation4], 128, 128, 8
    $region41: #{token_proj_forward.1} parent=1 // pred_fallthru
      _
    // Predicated region
    $region42: #{token_proj_forward.1} parent=1 // pred_check
      _
    $region43: #{token_proj_forward.1} parent=1 // pred_check_branch
      %1790 = sbr.rel (0) target = $region45
    $region44: #{token_proj_forward.1} parent=1 // pred_region
      %1791 = dma.done [#allocation4], 512
    $region45: #{token_proj_forward.1} parent=1 // pred_fallthru
      _
    %1792 = vsyncpa [#allocation3], 1
    %1793 = vsyncpa [#allocation4], 1

</llo_original>
